<compile_context>
chip_gen: v5e
topology: v5e:2x2
jax: 0.10.0
libtpu: 0.0.40
codegen_flags: <defaults>
</compile_context>

<pallas_src>
import math

import jax
import jax.numpy as jnp
from jax import lax
from jax.experimental import pallas as pl
from jax.experimental.pallas import tpu as pltpu

# ---------------- synthetic config (small) ----------------
POS_EMBED_DIM   = 16                                   # encoder.pos_embed_dim
JOINT_EMBED_DIM = 32                                   # encoder.joint_embed_dim
NUM_JOINTS      = 8
D_MODEL         = 2 * POS_EMBED_DIM + JOINT_EMBED_DIM  # 64
NHEAD           = 4
HEAD_DIM        = D_MODEL // NHEAD                     # 16
DIM_FF          = 128
NUM_LAYERS      = 2
POS_MASK_SIZE   = 16
LN_EPS          = 1e-5
ATTN_SCALE      = 1.0 / math.sqrt(HEAD_DIM)
OUT_LANES       = 128                                  # lane-dense output block

# ---------------- packed-weight-slab layout ----------------
SLAB_W   = 3 * D_MODEL          # 192 lanes (widest array: in_proj)
OFF_IPW  = 0                    # in_proj_wT   (D_MODEL, 3*D_MODEL)
OFF_OPW  = OFF_IPW + D_MODEL    # out_proj_wT  (D_MODEL, D_MODEL)
OFF_F1W  = OFF_OPW + D_MODEL    # ff1_wT       (D_MODEL, DIM_FF)
OFF_F2W  = OFF_F1W + D_MODEL    # ff2_wT       (DIM_FF,  D_MODEL)
OFF_VEC  = OFF_F2W + DIM_FF     # 8 rows: ipb, opb, g1, b1, f1b, f2b, g2, b2
LAYER_ROWS = OFF_VEC + 8        # 328 (multiple of 8)
EST_ROW  = NUM_LAYERS * LAYER_ROWS          # est_w at EST_ROW, est_b at EST_ROW+1
SLAB_ROWS = ((EST_ROW + 2 + 7) // 8) * 8    # pad to multiple of 8 sublanes


# ---------------- fused Pallas kernel ----------------
def _layer_norm(y, g, b):
    mu = jnp.mean(y, axis=-1, keepdims=True)
    c = y - mu
    var = jnp.mean(c * c, axis=-1, keepdims=True)
    return c * lax.rsqrt(var + LN_EPS) * g + b


def _fused_forward_kernel(x_ref, w_ref, o_ref):
    x = x_ref[...]                    # (S*N, E) f32, row = s*N + n
    SN = x.shape[0]

    # Attention is over the sequence axis only: row i may attend row j iff
    # they share the same joint column n, i.e. i % N == j % N.  Built once
    # for the head-stacked (NHEAD*SN, SN) score slab (valid since SN % N == 0).
    rn = lax.broadcasted_iota(jnp.int32, (NHEAD * SN, SN), 0) % NUM_JOINTS
    cn = lax.broadcasted_iota(jnp.int32, (NHEAD * SN, SN), 1) % NUM_JOINTS
    allow = rn == cn

    for l in range(NUM_LAYERS):
        base = l * LAYER_ROWS
        ipw = w_ref[base + OFF_IPW: base + OFF_IPW + D_MODEL, :]            # (64, 192)
        opw = w_ref[base + OFF_OPW: base + OFF_OPW + D_MODEL, :D_MODEL]     # (64, 64)
        f1w = w_ref[base + OFF_F1W: base + OFF_F1W + D_MODEL, :DIM_FF]      # (64, 128)
        f2w = w_ref[base + OFF_F2W: base + OFF_F2W + DIM_FF, :D_MODEL]      # (128, 64)
        v0 = base + OFF_VEC
        ipb = w_ref[v0 + 0: v0 + 1, :]                                      # (1, 192)
        opb = w_ref[v0 + 1: v0 + 2, :D_MODEL]
        g1  = w_ref[v0 + 2: v0 + 3, :D_MODEL]
        b1  = w_ref[v0 + 3: v0 + 4, :D_MODEL]
        f1b = w_ref[v0 + 4: v0 + 5, :DIM_FF]
        f2b = w_ref[v0 + 5: v0 + 6, :D_MODEL]
        g2  = w_ref[v0 + 6: v0 + 7, :D_MODEL]
        b2  = w_ref[v0 + 7: v0 + 8, :D_MODEL]

        # ----- multi-head self-attention (post-norm, dropout = 0) -----
        qkv = jnp.dot(x, ipw, preferred_element_type=jnp.float32) + ipb     # (SN, 192)

        # All-head score slab stacked along SUBLANES (no lane relayout).
        scores = []
        for h in range(NHEAD):
            lo = h * HEAD_DIM
            q = qkv[:, lo:lo + HEAD_DIM]
            k = qkv[:, D_MODEL + lo:D_MODEL + lo + HEAD_DIM]
            scores.append(lax.dot_general(q, k, (((1,), (1,)), ((), ())),
                                          preferred_element_type=jnp.float32))
        s = jnp.concatenate(scores, axis=0) * ATTN_SCALE                    # (4*SN, SN)
        s = jnp.where(allow, s, -1e30)
        s = s - jnp.max(s, axis=-1, keepdims=True)
        p = jnp.exp(s)
        p = p * pl.reciprocal(jnp.sum(p, axis=-1, keepdims=True), approx=True)

        # Per-head PV + out-projection, accumulated (no head concatenate).
        attn = jnp.zeros((SN, D_MODEL), jnp.float32)
        for h in range(NHEAD):
            lo = h * HEAD_DIM
            v = qkv[:, 2 * D_MODEL + lo:2 * D_MODEL + lo + HEAD_DIM]
            hv = jnp.dot(p[h * SN:(h + 1) * SN, :], v,
                         preferred_element_type=jnp.float32)                # (SN, HD)
            attn = attn + jnp.dot(hv, opw[lo:lo + HEAD_DIM, :],
                                  preferred_element_type=jnp.float32)       # (SN, D)
        attn = attn + opb
        x = _layer_norm(x + attn, g1, b1)

        # ----- feed-forward (ReLU) -----
        ff = jnp.dot(x, f1w, preferred_element_type=jnp.float32) + f1b
        ff = jnp.maximum(ff, 0.0)
        ff = jnp.dot(ff, f2w, preferred_element_type=jnp.float32) + f2b
        x = _layer_norm(x + ff, g2, b2)

    # ----- estimation head (Nout = 1): VPU multiply + row-sum, lane-dense store -----
    est_w = w_ref[EST_ROW: EST_ROW + 1, :D_MODEL]                           # (1, 64)
    est_b = w_ref[EST_ROW + 1: EST_ROW + 2, 0:1]                            # (1, 1)
    pred = jnp.sum(x * est_w, axis=-1, keepdims=True) + est_b               # (SN, 1)
    o_ref[...] = jnp.broadcast_to(pred, o_ref.shape)                        # (SN, 128)


def fused_forward(features_slab, weight_slab):
    """features_slab: (S*N, E) f32; weight_slab: (SLAB_ROWS, SLAB_W) f32."""
    SN, _ = features_slab.shape
    out = pl.pallas_call(
        _fused_forward_kernel,
        out_shape=jax.ShapeDtypeStruct((SN, OUT_LANES), jnp.float32),
        in_specs=[pl.BlockSpec(memory_space=pltpu.MemorySpace.VMEM),
                  pl.BlockSpec(memory_space=pltpu.MemorySpace.VMEM)],
        out_specs=pl.BlockSpec(memory_space=pltpu.MemorySpace.VMEM),
    )(features_slab, weight_slab)
    return out[:, 0:1]                                                       # (SN, 1)


# ---------------- JAX glue (setup / gather only) ----------------
def position_embedding_sine(mask_size, num_pos_feats, temperature=100.0,
                            scale=2.0 * math.pi):
    # mask is all-zeros -> not_mask is all-True (matches __init__ constant)
    M = mask_size
    not_mask = jnp.ones((1, M, M), dtype=jnp.float32)
    y_embed = jnp.cumsum(not_mask, axis=1)
    x_embed = jnp.cumsum(not_mask, axis=2)
    eps = 1e-6
    y_embed = y_embed / (y_embed[:, -1:, :] + eps) * scale
    x_embed = x_embed / (x_embed[:, :, -1:] + eps) * scale
    dim_t = jnp.arange(num_pos_feats, dtype=jnp.float32)
    dim_t = temperature ** (2.0 * jnp.floor(dim_t / 2.0) / num_pos_feats)
    pos_x = x_embed[:, :, :, None] / dim_t
    pos_y = y_embed[:, :, :, None] / dim_t
    pos_x = jnp.stack([jnp.sin(pos_x[..., 0::2]), jnp.cos(pos_x[..., 1::2])],
                      axis=4).reshape(1, M, M, num_pos_feats)
    pos_y = jnp.stack([jnp.sin(pos_y[..., 0::2]), jnp.cos(pos_y[..., 1::2])],
                      axis=4).reshape(1, M, M, num_pos_feats)
    pos = jnp.concatenate([pos_y, pos_x], axis=3)
    return jnp.transpose(pos, (0, 3, 1, 2))        # NCHW: (1, 2F, M, M)


def grid_sample_nearest(pos, grid):
    # pos: (1, C, H, W); grid: (B, 1, J, 2) with last dim (x, y) in [-1, 1]
    # nearest, align_corners=True, zero padding for out-of-bounds.
    C, H, W = pos.shape[1], pos.shape[2], pos.shape[3]
    gx = grid[:, 0, :, 0]
    gy = grid[:, 0, :, 1]
    ix = jnp.round((gx + 1.0) * 0.5 * (W - 1))
    iy = jnp.round((gy + 1.0) * 0.5 * (H - 1))
    valid = (ix >= 0) & (ix <= W - 1) & (iy >= 0) & (iy <= H - 1)
    ixc = jnp.clip(ix, 0, W - 1).astype(jnp.int32)
    iyc = jnp.clip(iy, 0, H - 1).astype(jnp.int32)
    vals = pos[0][:, iyc, ixc]                     # (C, B, J)
    vals = jnp.where(valid[None, :, :], vals, 0.0)
    return jnp.transpose(vals, (1, 2, 0))          # (B, J, C)


def get_pos_embedding(pos_const, uv, Kmat):
    B, J, _ = uv.shape
    roots = jnp.broadcast_to(uv[:, :1, :], uv.shape)
    fx = Kmat[:, 0, 0][:, None, None]
    fy = Kmat[:, 1, 1][:, None, None]
    f = jnp.concatenate([jnp.broadcast_to(fx, (B, J, 1)),
                         jnp.broadcast_to(fy, (B, J, 1))], axis=-1)
    rel = (uv - roots) / f
    grids = rel[:, None, :, :].astype(jnp.float32)   # (B, 1, J, 2)
    return grid_sample_nearest(pos_const, grids)     # (B, J, 2F)


# ---------------- model ----------------
def pack_params(params):
    """Pack every weight/bias into one lane-padded (SLAB_ROWS, SLAB_W) f32 slab."""
    def pad_w(a):
        return jnp.pad(a.astype(jnp.float32), ((0, 0), (0, SLAB_W - a.shape[1])))

    blocks = []
    for lp in params['layers']:
        blocks += [pad_w(lp['in_proj_wT']), pad_w(lp['out_proj_wT']),
                   pad_w(lp['ff1_wT']), pad_w(lp['ff2_wT'])]
        blocks += [pad_w(v) for v in (lp['in_proj_b'], lp['out_proj_b'],
                                      lp['ln1_g'], lp['ln1_b'],
                                      lp['ff1_b'], lp['ff2_b'],
                                      lp['ln2_g'], lp['ln2_b'])]
    blocks += [pad_w(params['est_w']), pad_w(params['est_b'])]
    slab = jnp.concatenate(blocks, axis=0)
    pad_rows = SLAB_ROWS - slab.shape[0]
    if pad_rows:
        slab = jnp.pad(slab, ((0, pad_rows), (0, 0)))
    return slab


def model_forward(joint_embed, weight_slab, pos_const, uv, Kmat):
    B = uv.shape[0]
    pos_emb = get_pos_embedding(pos_const, uv, Kmat)                        # (B, J, 2F)
    joint = jnp.broadcast_to(joint_embed[None], (B, NUM_JOINTS, JOINT_EMBED_DIM))
    features = jnp.concatenate([pos_emb, joint], axis=-1)                   # (B, J, D)
    # PyTorch default batch_first=False => encoder sees (seq=B, batch=J, embed).
    # Row-major flatten gives row = s*N + n, exactly what the kernel assumes.
    slab = features.reshape(B * NUM_JOINTS, D_MODEL).astype(jnp.float32)
    pred = fused_forward(slab, weight_slab)                                 # (B*J, 1)
    return pred.reshape(B, NUM_JOINTS)                                      # (B, J)


def init_params(key):
    # All projection weights stored PRE-TRANSPOSED as (K, Nout); biases as (1, Nout).
    def nrm(k, shape, s=0.02):
        return s * jax.random.normal(k, shape, dtype=jnp.float32)

    params = {}
    key, k = jax.random.split(key)
    params['joint_embed'] = nrm(k, (NUM_JOINTS, JOINT_EMBED_DIM), 1.0)
    layers = []
    for _ in range(NUM_LAYERS):
        key, k0, k1, k2, k3 = jax.random.split(key, 5)
        layers.append({
            'in_proj_wT':  nrm(k0, (D_MODEL, 3 * D_MODEL)),
            'in_proj_b':   jnp.zeros((1, 3 * D_MODEL), jnp.float32),
            'out_proj_wT': nrm(k1, (D_MODEL, D_MODEL)),
            'out_proj_b':  jnp.zeros((1, D_MODEL), jnp.float32),
            'ff1_wT':      nrm(k2, (D_MODEL, DIM_FF)),
            'ff1_b':       jnp.zeros((1, DIM_FF), jnp.float32),
            'ff2_wT':      nrm(k3, (DIM_FF, D_MODEL)),
            'ff2_b':       jnp.zeros((1, D_MODEL), jnp.float32),
            'ln1_g':       jnp.ones((1, D_MODEL), jnp.float32),
            'ln1_b':       jnp.zeros((1, D_MODEL), jnp.float32),
            'ln2_g':       jnp.ones((1, D_MODEL), jnp.float32),
            'ln2_b':       jnp.zeros((1, D_MODEL), jnp.float32),
        })
    params['layers'] = layers
    key, k = jax.random.split(key)
    params['est_w'] = nrm(k, (1, D_MODEL))
    params['est_b'] = jnp.zeros((1, 1), jnp.float32)
    return params


if __name__ == "__main__":
    key = jax.random.PRNGKey(0)
    B = 2

    pos_const = position_embedding_sine(POS_MASK_SIZE, POS_EMBED_DIM)       # (1, 32, 16, 16)

    key, kp, ku = jax.random.split(key, 3)
    params = init_params(kp)
    weight_slab = pack_params(params)                                       # (664, 192)

    # inputs: 2D keypoints 'uv' (B, J, 2) and camera intrinsics 'K' (B, 3, 3)
    uv = jax.random.uniform(ku, (B, NUM_JOINTS, 2), minval=50.0, maxval=450.0,
                            dtype=jnp.float32)
    Kmat = jnp.zeros((B, 3, 3), jnp.float32)
    Kmat = Kmat.at[:, 0, 0].set(jnp.array([480.0, 520.0]))
    Kmat = Kmat.at[:, 1, 1].set(jnp.array([470.0, 510.0]))
    Kmat = Kmat.at[:, 0, 2].set(256.0)
    Kmat = Kmat.at[:, 1, 2].set(256.0)
    Kmat = Kmat.at[:, 2, 2].set(1.0)

    fwd = jax.jit(model_forward)
    pred = fwd(params['joint_embed'], weight_slab, pos_const, uv, Kmat)
    jax.block_until_ready(pred)
    assert pred.shape == (B, NUM_JOINTS), pred.shape
    assert bool(jnp.all(jnp.isfinite(pred)))
    print("KERNEL_OK")
</pallas_src>

<mosaic_0001>
module attributes {stable_mosaic.version = 11 : i64} {
  func.func @_fused_forward_kernel(%arg0: memref<16x64xf32, #tpu.memory_space<vmem>>, %arg1: memref<664x192xf32, #tpu.memory_space<vmem>>, %arg2: memref<16x128xf32, #tpu.memory_space<vmem>>) attributes {dimension_semantics = [], scalar_prefetch = 0 : i64, scratch_operands = 0 : i64, tpu.core_type = #tpu.core_type<tc>} {
    %c0 = arith.constant 0 : index
    %c0_0 = arith.constant 0 : index
    %0 = vector.load %arg0[%c0, %c0_0] : memref<16x64xf32, #tpu.memory_space<vmem>>, vector<16x64xf32>
    %1 = tpu.iota {dimensions = array<i32: 0>} : vector<64x16xi32>
    %c8_i32 = arith.constant 8 : i32
    %c0_i32 = arith.constant 0 : i32
    %2 = arith.cmpi eq, %c8_i32, %c0_i32 : i32
    %c1_i32 = arith.constant 1 : i32
    %3 = arith.select %2, %c1_i32, %c8_i32 : i32
    %4 = vector.broadcast %3 : i32 to vector<64x16xi32>
    %5 = arith.remsi %1, %4 : vector<64x16xi32>
    %c0_i32_1 = arith.constant 0 : i32
    %6 = vector.broadcast %c0_i32_1 : i32 to vector<64x16xi32>
    %7 = arith.cmpi ne, %5, %6 : vector<64x16xi32>
    %c0_i32_2 = arith.constant 0 : i32
    %8 = vector.broadcast %c0_i32_2 : i32 to vector<64x16xi32>
    %9 = arith.cmpi slt, %5, %8 : vector<64x16xi32>
    %c0_i32_3 = arith.constant 0 : i32
    %10 = arith.cmpi slt, %3, %c0_i32_3 : i32
    %11 = vector.broadcast %10 : i1 to vector<64x16xi1>
    %12 = vector.broadcast %11 : vector<64x16xi1> to vector<64x16xi1>
    %13 = arith.xori %9, %12 : vector<64x16xi1>
    %14 = arith.andi %13, %7 : vector<64x16xi1>
    %15 = vector.broadcast %3 : i32 to vector<64x16xi32>
    %16 = arith.addi %5, %15 : vector<64x16xi32>
    %17 = arith.select %14, %16, %5 : vector<64x16xi1>, vector<64x16xi32>
    %18 = tpu.iota {dimensions = array<i32: 1>} : vector<64x16xi32>
    %c8_i32_4 = arith.constant 8 : i32
    %c0_i32_5 = arith.constant 0 : i32
    %19 = arith.cmpi eq, %c8_i32_4, %c0_i32_5 : i32
    %c1_i32_6 = arith.constant 1 : i32
    %20 = arith.select %19, %c1_i32_6, %c8_i32_4 : i32
    %21 = vector.broadcast %20 : i32 to vector<64x16xi32>
    %22 = arith.remsi %18, %21 : vector<64x16xi32>
    %c0_i32_7 = arith.constant 0 : i32
    %23 = vector.broadcast %c0_i32_7 : i32 to vector<64x16xi32>
    %24 = arith.cmpi ne, %22, %23 : vector<64x16xi32>
    %c0_i32_8 = arith.constant 0 : i32
    %25 = vector.broadcast %c0_i32_8 : i32 to vector<64x16xi32>
    %26 = arith.cmpi slt, %22, %25 : vector<64x16xi32>
    %c0_i32_9 = arith.constant 0 : i32
    %27 = arith.cmpi slt, %20, %c0_i32_9 : i32
    %28 = vector.broadcast %27 : i1 to vector<64x16xi1>
    %29 = vector.broadcast %28 : vector<64x16xi1> to vector<64x16xi1>
    %30 = arith.xori %26, %29 : vector<64x16xi1>
    %31 = arith.andi %30, %24 : vector<64x16xi1>
    %32 = vector.broadcast %20 : i32 to vector<64x16xi32>
    %33 = arith.addi %22, %32 : vector<64x16xi32>
    %34 = arith.select %31, %33, %22 : vector<64x16xi1>, vector<64x16xi32>
    %35 = arith.cmpi eq, %17, %34 : vector<64x16xi32>
    %c0_10 = arith.constant 0 : index
    %c0_11 = arith.constant 0 : index
    %36 = vector.load %arg1[%c0_10, %c0_11] : memref<664x192xf32, #tpu.memory_space<vmem>>, vector<64x192xf32>
    %c64 = arith.constant 64 : index
    %c0_12 = arith.constant 0 : index
    %37 = vector.load %arg1[%c64, %c0_12] : memref<664x192xf32, #tpu.memory_space<vmem>>, vector<64x64xf32>
    %c128 = arith.constant 128 : index
    %c0_13 = arith.constant 0 : index
    %38 = vector.load %arg1[%c128, %c0_13] : memref<664x192xf32, #tpu.memory_space<vmem>>, vector<64x128xf32>
    %c192 = arith.constant 192 : index
    %c0_14 = arith.constant 0 : index
    %39 = vector.load %arg1[%c192, %c0_14] : memref<664x192xf32, #tpu.memory_space<vmem>>, vector<128x64xf32>
    %c320 = arith.constant 320 : index
    %c0_15 = arith.constant 0 : index
    %40 = vector.load %arg1[%c320, %c0_15] : memref<664x192xf32, #tpu.memory_space<vmem>>, vector<1x192xf32>
    %c321 = arith.constant 321 : index
    %c0_16 = arith.constant 0 : index
    %41 = vector.load %arg1[%c321, %c0_16] : memref<664x192xf32, #tpu.memory_space<vmem>>, vector<1x64xf32>
    %c322 = arith.constant 322 : index
    %c0_17 = arith.constant 0 : index
    %42 = vector.load %arg1[%c322, %c0_17] : memref<664x192xf32, #tpu.memory_space<vmem>>, vector<1x64xf32>
    %c323 = arith.constant 323 : index
    %c0_18 = arith.constant 0 : index
    %43 = vector.load %arg1[%c323, %c0_18] : memref<664x192xf32, #tpu.memory_space<vmem>>, vector<1x64xf32>
    %c324 = arith.constant 324 : index
    %c0_19 = arith.constant 0 : index
    %44 = vector.load %arg1[%c324, %c0_19] : memref<664x192xf32, #tpu.memory_space<vmem>>, vector<1x128xf32>
    %c325 = arith.constant 325 : index
    %c0_20 = arith.constant 0 : index
    %45 = vector.load %arg1[%c325, %c0_20] : memref<664x192xf32, #tpu.memory_space<vmem>>, vector<1x64xf32>
    %c326 = arith.constant 326 : index
    %c0_21 = arith.constant 0 : index
    %46 = vector.load %arg1[%c326, %c0_21] : memref<664x192xf32, #tpu.memory_space<vmem>>, vector<1x64xf32>
    %c327 = arith.constant 327 : index
    %c0_22 = arith.constant 0 : index
    %47 = vector.load %arg1[%c327, %c0_22] : memref<664x192xf32, #tpu.memory_space<vmem>>, vector<1x64xf32>
    %cst = arith.constant dense<0.000000e+00> : vector<16x192xf32>
    %48 = tpu.matmul %0, %36, %cst {dimension_numbers = #tpu.dot_dimension_numbers<[1], [0], [0], [1], [0, 0, 1, 1], [], []>} : vector<16x64xf32>, vector<64x192xf32>, vector<16x192xf32> -> vector<16x192xf32>
    %49 = vector.broadcast %40 : vector<1x192xf32> to vector<16x192xf32>
    %50 = arith.addf %48, %49 : vector<16x192xf32>
    %51 = vector.extract_strided_slice %50 {offsets = [0, 0], sizes = [16, 16], strides = [1, 1]} : vector<16x192xf32> to vector<16x16xf32>
    %52 = vector.extract_strided_slice %50 {offsets = [0, 64], sizes = [16, 16], strides = [1, 1]} : vector<16x192xf32> to vector<16x16xf32>
    %cst_23 = arith.constant dense<0.000000e+00> : vector<16x16xf32>
    %53 = tpu.matmul %51, %52, %cst_23 {dimension_numbers = #tpu.dot_dimension_numbers<[1], [1], [0], [0], [0, 0, 1, 0], [], []>} : vector<16x16xf32>, vector<16x16xf32>, vector<16x16xf32> -> vector<16x16xf32>
    %54 = vector.extract_strided_slice %50 {offsets = [0, 16], sizes = [16, 16], strides = [1, 1]} : vector<16x192xf32> to vector<16x16xf32>
    %55 = vector.extract_strided_slice %50 {offsets = [0, 80], sizes = [16, 16], strides = [1, 1]} : vector<16x192xf32> to vector<16x16xf32>
    %cst_24 = arith.constant dense<0.000000e+00> : vector<16x16xf32>
    %56 = tpu.matmul %54, %55, %cst_24 {dimension_numbers = #tpu.dot_dimension_numbers<[1], [1], [0], [0], [0, 0, 1, 0], [], []>} : vector<16x16xf32>, vector<16x16xf32>, vector<16x16xf32> -> vector<16x16xf32>
    %57 = vector.extract_strided_slice %50 {offsets = [0, 32], sizes = [16, 16], strides = [1, 1]} : vector<16x192xf32> to vector<16x16xf32>
    %58 = vector.extract_strided_slice %50 {offsets = [0, 96], sizes = [16, 16], strides = [1, 1]} : vector<16x192xf32> to vector<16x16xf32>
    %cst_25 = arith.constant dense<0.000000e+00> : vector<16x16xf32>
    %59 = tpu.matmul %57, %58, %cst_25 {dimension_numbers = #tpu.dot_dimension_numbers<[1], [1], [0], [0], [0, 0, 1, 0], [], []>} : vector<16x16xf32>, vector<16x16xf32>, vector<16x16xf32> -> vector<16x16xf32>
    %60 = vector.extract_strided_slice %50 {offsets = [0, 48], sizes = [16, 16], strides = [1, 1]} : vector<16x192xf32> to vector<16x16xf32>
    %61 = vector.extract_strided_slice %50 {offsets = [0, 112], sizes = [16, 16], strides = [1, 1]} : vector<16x192xf32> to vector<16x16xf32>
    %cst_26 = arith.constant dense<0.000000e+00> : vector<16x16xf32>
    %62 = tpu.matmul %60, %61, %cst_26 {dimension_numbers = #tpu.dot_dimension_numbers<[1], [1], [0], [0], [0, 0, 1, 0], [], []>} : vector<16x16xf32>, vector<16x16xf32>, vector<16x16xf32> -> vector<16x16xf32>
    %63 = tpu.concatenate %53, %56, %59, %62 in 0 : vector<16x16xf32>, vector<16x16xf32>, vector<16x16xf32>, vector<16x16xf32> -> vector<64x16xf32>
    %cst_27 = arith.constant 2.500000e-01 : f32
    %64 = vector.broadcast %cst_27 : f32 to vector<64x16xf32>
    %65 = arith.mulf %63, %64 : vector<64x16xf32>
    %cst_28 = arith.constant -1.000000e+30 : f32
    %66 = vector.broadcast %cst_28 : f32 to vector<64x16xf32>
    %67 = arith.select %35, %65, %66 : vector<64x16xi1>, vector<64x16xf32>
    %cst_29 = arith.constant dense<0xFF800000> : vector<64xf32>
    %68 = vector.multi_reduction <maximumf>, %67, %cst_29 [1] : vector<64x16xf32> to vector<64xf32>
    %69 = vector.shape_cast %68 : vector<64xf32> to vector<64x1xf32>
    %70 = vector.broadcast %69 : vector<64x1xf32> to vector<64x16xf32>
    %71 = arith.subf %67, %70 : vector<64x16xf32>
    %72 = math.exp %71 : vector<64x16xf32>
    %cst_30 = arith.constant dense<0.000000e+00> : vector<64xf32>
    %73 = vector.multi_reduction <add>, %72, %cst_30 [1] : vector<64x16xf32> to vector<64xf32>
    %74 = vector.shape_cast %73 : vector<64xf32> to vector<64x1xf32>
    %75 = tpu.reciprocal %74 {approx = true} : vector<64x1xf32> -> vector<64x1xf32>
    %76 = vector.broadcast %75 : vector<64x1xf32> to vector<64x16xf32>
    %77 = arith.mulf %72, %76 : vector<64x16xf32>
    %cst_31 = arith.constant 0.000000e+00 : f32
    %78 = vector.broadcast %cst_31 : f32 to vector<16x64xf32>
    %79 = vector.extract_strided_slice %50 {offsets = [0, 128], sizes = [16, 16], strides = [1, 1]} : vector<16x192xf32> to vector<16x16xf32>
    %80 = vector.extract_strided_slice %77 {offsets = [0, 0], sizes = [16, 16], strides = [1, 1]} : vector<64x16xf32> to vector<16x16xf32>
    %cst_32 = arith.constant dense<0.000000e+00> : vector<16x16xf32>
    %81 = tpu.matmul %80, %79, %cst_32 {dimension_numbers = #tpu.dot_dimension_numbers<[1], [0], [0], [1], [0, 0, 1, 1], [], []>} : vector<16x16xf32>, vector<16x16xf32>, vector<16x16xf32> -> vector<16x16xf32>
    %82 = vector.extract_strided_slice %37 {offsets = [0, 0], sizes = [16, 64], strides = [1, 1]} : vector<64x64xf32> to vector<16x64xf32>
    %cst_33 = arith.constant dense<0.000000e+00> : vector<16x64xf32>
    %83 = tpu.matmul %81, %82, %cst_33 {dimension_numbers = #tpu.dot_dimension_numbers<[1], [0], [0], [1], [0, 0, 1, 1], [], []>} : vector<16x16xf32>, vector<16x64xf32>, vector<16x64xf32> -> vector<16x64xf32>
    %84 = arith.addf %78, %83 : vector<16x64xf32>
    %85 = vector.extract_strided_slice %50 {offsets = [0, 144], sizes = [16, 16], strides = [1, 1]} : vector<16x192xf32> to vector<16x16xf32>
    %86 = vector.extract_strided_slice %77 {offsets = [16, 0], sizes = [16, 16], strides = [1, 1]} : vector<64x16xf32> to vector<16x16xf32>
    %cst_34 = arith.constant dense<0.000000e+00> : vector<16x16xf32>
    %87 = tpu.matmul %86, %85, %cst_34 {dimension_numbers = #tpu.dot_dimension_numbers<[1], [0], [0], [1], [0, 0, 1, 1], [], []>} : vector<16x16xf32>, vector<16x16xf32>, vector<16x16xf32> -> vector<16x16xf32>
    %88 = vector.extract_strided_slice %37 {offsets = [16, 0], sizes = [16, 64], strides = [1, 1]} : vector<64x64xf32> to vector<16x64xf32>
    %cst_35 = arith.constant dense<0.000000e+00> : vector<16x64xf32>
    %89 = tpu.matmul %87, %88, %cst_35 {dimension_numbers = #tpu.dot_dimension_numbers<[1], [0], [0], [1], [0, 0, 1, 1], [], []>} : vector<16x16xf32>, vector<16x64xf32>, vector<16x64xf32> -> vector<16x64xf32>
    %90 = arith.addf %84, %89 : vector<16x64xf32>
    %91 = vector.extract_strided_slice %50 {offsets = [0, 160], sizes = [16, 16], strides = [1, 1]} : vector<16x192xf32> to vector<16x16xf32>
    %92 = vector.extract_strided_slice %77 {offsets = [32, 0], sizes = [16, 16], strides = [1, 1]} : vector<64x16xf32> to vector<16x16xf32>
    %cst_36 = arith.constant dense<0.000000e+00> : vector<16x16xf32>
    %93 = tpu.matmul %92, %91, %cst_36 {dimension_numbers = #tpu.dot_dimension_numbers<[1], [0], [0], [1], [0, 0, 1, 1], [], []>} : vector<16x16xf32>, vector<16x16xf32>, vector<16x16xf32> -> vector<16x16xf32>
    %94 = vector.extract_strided_slice %37 {offsets = [32, 0], sizes = [16, 64], strides = [1, 1]} : vector<64x64xf32> to vector<16x64xf32>
    %cst_37 = arith.constant dense<0.000000e+00> : vector<16x64xf32>
    %95 = tpu.matmul %93, %94, %cst_37 {dimension_numbers = #tpu.dot_dimension_numbers<[1], [0], [0], [1], [0, 0, 1, 1], [], []>} : vector<16x16xf32>, vector<16x64xf32>, vector<16x64xf32> -> vector<16x64xf32>
    %96 = arith.addf %90, %95 : vector<16x64xf32>
    %97 = vector.extract_strided_slice %50 {offsets = [0, 176], sizes = [16, 16], strides = [1, 1]} : vector<16x192xf32> to vector<16x16xf32>
    %98 = vector.extract_strided_slice %77 {offsets = [48, 0], sizes = [16, 16], strides = [1, 1]} : vector<64x16xf32> to vector<16x16xf32>
    %cst_38 = arith.constant dense<0.000000e+00> : vector<16x16xf32>
    %99 = tpu.matmul %98, %97, %cst_38 {dimension_numbers = #tpu.dot_dimension_numbers<[1], [0], [0], [1], [0, 0, 1, 1], [], []>} : vector<16x16xf32>, vector<16x16xf32>, vector<16x16xf32> -> vector<16x16xf32>
    %100 = vector.extract_strided_slice %37 {offsets = [48, 0], sizes = [16, 64], strides = [1, 1]} : vector<64x64xf32> to vector<16x64xf32>
    %cst_39 = arith.constant dense<0.000000e+00> : vector<16x64xf32>
    %101 = tpu.matmul %99, %100, %cst_39 {dimension_numbers = #tpu.dot_dimension_numbers<[1], [0], [0], [1], [0, 0, 1, 1], [], []>} : vector<16x16xf32>, vector<16x64xf32>, vector<16x64xf32> -> vector<16x64xf32>
    %102 = arith.addf %96, %101 : vector<16x64xf32>
    %103 = vector.broadcast %41 : vector<1x64xf32> to vector<16x64xf32>
    %104 = arith.addf %102, %103 : vector<16x64xf32>
    %105 = arith.addf %0, %104 : vector<16x64xf32>
    %cst_40 = arith.constant dense<0.000000e+00> : vector<16xf32>
    %106 = vector.multi_reduction <add>, %105, %cst_40 [1] : vector<16x64xf32> to vector<16xf32>
    %107 = vector.shape_cast %106 : vector<16xf32> to vector<16x1xf32>
    %cst_41 = arith.constant 6.400000e+01 : f32
    %108 = vector.broadcast %cst_41 : f32 to vector<16x1xf32>
    %109 = arith.divf %107, %108 : vector<16x1xf32>
    %110 = vector.broadcast %109 : vector<16x1xf32> to vector<16x64xf32>
    %111 = arith.subf %105, %110 : vector<16x64xf32>
    %112 = arith.mulf %111, %111 : vector<16x64xf32>
    %cst_42 = arith.constant dense<0.000000e+00> : vector<16xf32>
    %113 = vector.multi_reduction <add>, %112, %cst_42 [1] : vector<16x64xf32> to vector<16xf32>
    %114 = vector.shape_cast %113 : vector<16xf32> to vector<16x1xf32>
    %cst_43 = arith.constant 6.400000e+01 : f32
    %115 = vector.broadcast %cst_43 : f32 to vector<16x1xf32>
    %116 = arith.divf %114, %115 : vector<16x1xf32>
    %cst_44 = arith.constant 9.99999974E-6 : f32
    %117 = vector.broadcast %cst_44 : f32 to vector<16x1xf32>
    %118 = arith.addf %116, %117 : vector<16x1xf32>
    %119 = math.rsqrt %118 : vector<16x1xf32>
    %120 = vector.broadcast %119 : vector<16x1xf32> to vector<16x64xf32>
    %121 = arith.mulf %111, %120 : vector<16x64xf32>
    %122 = vector.broadcast %42 : vector<1x64xf32> to vector<16x64xf32>
    %123 = arith.mulf %121, %122 : vector<16x64xf32>
    %124 = vector.broadcast %43 : vector<1x64xf32> to vector<16x64xf32>
    %125 = arith.addf %123, %124 : vector<16x64xf32>
    %cst_45 = arith.constant dense<0.000000e+00> : vector<16x128xf32>
    %126 = tpu.matmul %125, %38, %cst_45 {dimension_numbers = #tpu.dot_dimension_numbers<[1], [0], [0], [1], [0, 0, 1, 1], [], []>} : vector<16x64xf32>, vector<64x128xf32>, vector<16x128xf32> -> vector<16x128xf32>
    %127 = vector.broadcast %44 : vector<1x128xf32> to vector<16x128xf32>
    %128 = arith.addf %126, %127 : vector<16x128xf32>
    %cst_46 = arith.constant 0.000000e+00 : f32
    %129 = vector.broadcast %cst_46 : f32 to vector<16x128xf32>
    %130 = arith.maximumf %128, %129 : vector<16x128xf32>
    %cst_47 = arith.constant dense<0.000000e+00> : vector<16x64xf32>
    %131 = tpu.matmul %130, %39, %cst_47 {dimension_numbers = #tpu.dot_dimension_numbers<[1], [0], [0], [1], [0, 0, 1, 1], [], []>} : vector<16x128xf32>, vector<128x64xf32>, vector<16x64xf32> -> vector<16x64xf32>
    %132 = vector.broadcast %45 : vector<1x64xf32> to vector<16x64xf32>
    %133 = arith.addf %131, %132 : vector<16x64xf32>
    %134 = arith.addf %125, %133 : vector<16x64xf32>
    %cst_48 = arith.constant dense<0.000000e+00> : vector<16xf32>
    %135 = vector.multi_reduction <add>, %134, %cst_48 [1] : vector<16x64xf32> to vector<16xf32>
    %136 = vector.shape_cast %135 : vector<16xf32> to vector<16x1xf32>
    %cst_49 = arith.constant 6.400000e+01 : f32
    %137 = vector.broadcast %cst_49 : f32 to vector<16x1xf32>
    %138 = arith.divf %136, %137 : vector<16x1xf32>
    %139 = vector.broadcast %138 : vector<16x1xf32> to vector<16x64xf32>
    %140 = arith.subf %134, %139 : vector<16x64xf32>
    %141 = arith.mulf %140, %140 : vector<16x64xf32>
    %cst_50 = arith.constant dense<0.000000e+00> : vector<16xf32>
    %142 = vector.multi_reduction <add>, %141, %cst_50 [1] : vector<16x64xf32> to vector<16xf32>
    %143 = vector.shape_cast %142 : vector<16xf32> to vector<16x1xf32>
    %cst_51 = arith.constant 6.400000e+01 : f32
    %144 = vector.broadcast %cst_51 : f32 to vector<16x1xf32>
    %145 = arith.divf %143, %144 : vector<16x1xf32>
    %cst_52 = arith.constant 9.99999974E-6 : f32
    %146 = vector.broadcast %cst_52 : f32 to vector<16x1xf32>
    %147 = arith.addf %145, %146 : vector<16x1xf32>
    %148 = math.rsqrt %147 : vector<16x1xf32>
    %149 = vector.broadcast %148 : vector<16x1xf32> to vector<16x64xf32>
    %150 = arith.mulf %140, %149 : vector<16x64xf32>
    %151 = vector.broadcast %46 : vector<1x64xf32> to vector<16x64xf32>
    %152 = arith.mulf %150, %151 : vector<16x64xf32>
    %153 = vector.broadcast %47 : vector<1x64xf32> to vector<16x64xf32>
    %154 = arith.addf %152, %153 : vector<16x64xf32>
    %c328 = arith.constant 328 : index
    %c0_53 = arith.constant 0 : index
    %155 = vector.load %arg1[%c328, %c0_53] : memref<664x192xf32, #tpu.memory_space<vmem>>, vector<64x192xf32>
    %c392 = arith.constant 392 : index
    %c0_54 = arith.constant 0 : index
    %156 = vector.load %arg1[%c392, %c0_54] : memref<664x192xf32, #tpu.memory_space<vmem>>, vector<64x64xf32>
    %c456 = arith.constant 456 : index
    %c0_55 = arith.constant 0 : index
    %157 = vector.load %arg1[%c456, %c0_55] : memref<664x192xf32, #tpu.memory_space<vmem>>, vector<64x128xf32>
    %c520 = arith.constant 520 : index
    %c0_56 = arith.constant 0 : index
    %158 = vector.load %arg1[%c520, %c0_56] : memref<664x192xf32, #tpu.memory_space<vmem>>, vector<128x64xf32>
    %c648 = arith.constant 648 : index
    %c0_57 = arith.constant 0 : index
    %159 = vector.load %arg1[%c648, %c0_57] : memref<664x192xf32, #tpu.memory_space<vmem>>, vector<1x192xf32>
    %c649 = arith.constant 649 : index
    %c0_58 = arith.constant 0 : index
    %160 = vector.load %arg1[%c649, %c0_58] : memref<664x192xf32, #tpu.memory_space<vmem>>, vector<1x64xf32>
    %c650 = arith.constant 650 : index
    %c0_59 = arith.constant 0 : index
    %161 = vector.load %arg1[%c650, %c0_59] : memref<664x192xf32, #tpu.memory_space<vmem>>, vector<1x64xf32>
    %c651 = arith.constant 651 : index
    %c0_60 = arith.constant 0 : index
    %162 = vector.load %arg1[%c651, %c0_60] : memref<664x192xf32, #tpu.memory_space<vmem>>, vector<1x64xf32>
    %c652 = arith.constant 652 : index
    %c0_61 = arith.constant 0 : index
    %163 = vector.load %arg1[%c652, %c0_61] : memref<664x192xf32, #tpu.memory_space<vmem>>, vector<1x128xf32>
    %c653 = arith.constant 653 : index
    %c0_62 = arith.constant 0 : index
    %164 = vector.load %arg1[%c653, %c0_62] : memref<664x192xf32, #tpu.memory_space<vmem>>, vector<1x64xf32>
    %c654 = arith.constant 654 : index
    %c0_63 = arith.constant 0 : index
    %165 = vector.load %arg1[%c654, %c0_63] : memref<664x192xf32, #tpu.memory_space<vmem>>, vector<1x64xf32>
    %c655 = arith.constant 655 : index
    %c0_64 = arith.constant 0 : index
    %166 = vector.load %arg1[%c655, %c0_64] : memref<664x192xf32, #tpu.memory_space<vmem>>, vector<1x64xf32>
    %cst_65 = arith.constant dense<0.000000e+00> : vector<16x192xf32>
    %167 = tpu.matmul %154, %155, %cst_65 {dimension_numbers = #tpu.dot_dimension_numbers<[1], [0], [0], [1], [0, 0, 1, 1], [], []>} : vector<16x64xf32>, vector<64x192xf32>, vector<16x192xf32> -> vector<16x192xf32>
    %168 = vector.broadcast %159 : vector<1x192xf32> to vector<16x192xf32>
    %169 = arith.addf %167, %168 : vector<16x192xf32>
    %170 = vector.extract_strided_slice %169 {offsets = [0, 0], sizes = [16, 16], strides = [1, 1]} : vector<16x192xf32> to vector<16x16xf32>
    %171 = vector.extract_strided_slice %169 {offsets = [0, 64], sizes = [16, 16], strides = [1, 1]} : vector<16x192xf32> to vector<16x16xf32>
    %cst_66 = arith.constant dense<0.000000e+00> : vector<16x16xf32>
    %172 = tpu.matmul %170, %171, %cst_66 {dimension_numbers = #tpu.dot_dimension_numbers<[1], [1], [0], [0], [0, 0, 1, 0], [], []>} : vector<16x16xf32>, vector<16x16xf32>, vector<16x16xf32> -> vector<16x16xf32>
    %173 = vector.extract_strided_slice %169 {offsets = [0, 16], sizes = [16, 16], strides = [1, 1]} : vector<16x192xf32> to vector<16x16xf32>
    %174 = vector.extract_strided_slice %169 {offsets = [0, 80], sizes = [16, 16], strides = [1, 1]} : vector<16x192xf32> to vector<16x16xf32>
    %cst_67 = arith.constant dense<0.000000e+00> : vector<16x16xf32>
    %175 = tpu.matmul %173, %174, %cst_67 {dimension_numbers = #tpu.dot_dimension_numbers<[1], [1], [0], [0], [0, 0, 1, 0], [], []>} : vector<16x16xf32>, vector<16x16xf32>, vector<16x16xf32> -> vector<16x16xf32>
    %176 = vector.extract_strided_slice %169 {offsets = [0, 32], sizes = [16, 16], strides = [1, 1]} : vector<16x192xf32> to vector<16x16xf32>
    %177 = vector.extract_strided_slice %169 {offsets = [0, 96], sizes = [16, 16], strides = [1, 1]} : vector<16x192xf32> to vector<16x16xf32>
    %cst_68 = arith.constant dense<0.000000e+00> : vector<16x16xf32>
    %178 = tpu.matmul %176, %177, %cst_68 {dimension_numbers = #tpu.dot_dimension_numbers<[1], [1], [0], [0], [0, 0, 1, 0], [], []>} : vector<16x16xf32>, vector<16x16xf32>, vector<16x16xf32> -> vector<16x16xf32>
    %179 = vector.extract_strided_slice %169 {offsets = [0, 48], sizes = [16, 16], strides = [1, 1]} : vector<16x192xf32> to vector<16x16xf32>
    %180 = vector.extract_strided_slice %169 {offsets = [0, 112], sizes = [16, 16], strides = [1, 1]} : vector<16x192xf32> to vector<16x16xf32>
    %cst_69 = arith.constant dense<0.000000e+00> : vector<16x16xf32>
    %181 = tpu.matmul %179, %180, %cst_69 {dimension_numbers = #tpu.dot_dimension_numbers<[1], [1], [0], [0], [0, 0, 1, 0], [], []>} : vector<16x16xf32>, vector<16x16xf32>, vector<16x16xf32> -> vector<16x16xf32>
    %182 = tpu.concatenate %172, %175, %178, %181 in 0 : vector<16x16xf32>, vector<16x16xf32>, vector<16x16xf32>, vector<16x16xf32> -> vector<64x16xf32>
    %cst_70 = arith.constant 2.500000e-01 : f32
    %183 = vector.broadcast %cst_70 : f32 to vector<64x16xf32>
    %184 = arith.mulf %182, %183 : vector<64x16xf32>
    %cst_71 = arith.constant -1.000000e+30 : f32
    %185 = vector.broadcast %cst_71 : f32 to vector<64x16xf32>
    %186 = arith.select %35, %184, %185 : vector<64x16xi1>, vector<64x16xf32>
    %cst_72 = arith.constant dense<0xFF800000> : vector<64xf32>
    %187 = vector.multi_reduction <maximumf>, %186, %cst_72 [1] : vector<64x16xf32> to vector<64xf32>
    %188 = vector.shape_cast %187 : vector<64xf32> to vector<64x1xf32>
    %189 = vector.broadcast %188 : vector<64x1xf32> to vector<64x16xf32>
    %190 = arith.subf %186, %189 : vector<64x16xf32>
    %191 = math.exp %190 : vector<64x16xf32>
    %cst_73 = arith.constant dense<0.000000e+00> : vector<64xf32>
    %192 = vector.multi_reduction <add>, %191, %cst_73 [1] : vector<64x16xf32> to vector<64xf32>
    %193 = vector.shape_cast %192 : vector<64xf32> to vector<64x1xf32>
    %194 = tpu.reciprocal %193 {approx = true} : vector<64x1xf32> -> vector<64x1xf32>
    %195 = vector.broadcast %194 : vector<64x1xf32> to vector<64x16xf32>
    %196 = arith.mulf %191, %195 : vector<64x16xf32>
    %cst_74 = arith.constant 0.000000e+00 : f32
    %197 = vector.broadcast %cst_74 : f32 to vector<16x64xf32>
    %198 = vector.extract_strided_slice %169 {offsets = [0, 128], sizes = [16, 16], strides = [1, 1]} : vector<16x192xf32> to vector<16x16xf32>
    %199 = vector.extract_strided_slice %196 {offsets = [0, 0], sizes = [16, 16], strides = [1, 1]} : vector<64x16xf32> to vector<16x16xf32>
    %cst_75 = arith.constant dense<0.000000e+00> : vector<16x16xf32>
    %200 = tpu.matmul %199, %198, %cst_75 {dimension_numbers = #tpu.dot_dimension_numbers<[1], [0], [0], [1], [0, 0, 1, 1], [], []>} : vector<16x16xf32>, vector<16x16xf32>, vector<16x16xf32> -> vector<16x16xf32>
    %201 = vector.extract_strided_slice %156 {offsets = [0, 0], sizes = [16, 64], strides = [1, 1]} : vector<64x64xf32> to vector<16x64xf32>
    %cst_76 = arith.constant dense<0.000000e+00> : vector<16x64xf32>
    %202 = tpu.matmul %200, %201, %cst_76 {dimension_numbers = #tpu.dot_dimension_numbers<[1], [0], [0], [1], [0, 0, 1, 1], [], []>} : vector<16x16xf32>, vector<16x64xf32>, vector<16x64xf32> -> vector<16x64xf32>
    %203 = arith.addf %197, %202 : vector<16x64xf32>
    %204 = vector.extract_strided_slice %169 {offsets = [0, 144], sizes = [16, 16], strides = [1, 1]} : vector<16x192xf32> to vector<16x16xf32>
    %205 = vector.extract_strided_slice %196 {offsets = [16, 0], sizes = [16, 16], strides = [1, 1]} : vector<64x16xf32> to vector<16x16xf32>
    %cst_77 = arith.constant dense<0.000000e+00> : vector<16x16xf32>
    %206 = tpu.matmul %205, %204, %cst_77 {dimension_numbers = #tpu.dot_dimension_numbers<[1], [0], [0], [1], [0, 0, 1, 1], [], []>} : vector<16x16xf32>, vector<16x16xf32>, vector<16x16xf32> -> vector<16x16xf32>
    %207 = vector.extract_strided_slice %156 {offsets = [16, 0], sizes = [16, 64], strides = [1, 1]} : vector<64x64xf32> to vector<16x64xf32>
    %cst_78 = arith.constant dense<0.000000e+00> : vector<16x64xf32>
    %208 = tpu.matmul %206, %207, %cst_78 {dimension_numbers = #tpu.dot_dimension_numbers<[1], [0], [0], [1], [0, 0, 1, 1], [], []>} : vector<16x16xf32>, vector<16x64xf32>, vector<16x64xf32> -> vector<16x64xf32>
    %209 = arith.addf %203, %208 : vector<16x64xf32>
    %210 = vector.extract_strided_slice %169 {offsets = [0, 160], sizes = [16, 16], strides = [1, 1]} : vector<16x192xf32> to vector<16x16xf32>
    %211 = vector.extract_strided_slice %196 {offsets = [32, 0], sizes = [16, 16], strides = [1, 1]} : vector<64x16xf32> to vector<16x16xf32>
    %cst_79 = arith.constant dense<0.000000e+00> : vector<16x16xf32>
    %212 = tpu.matmul %211, %210, %cst_79 {dimension_numbers = #tpu.dot_dimension_numbers<[1], [0], [0], [1], [0, 0, 1, 1], [], []>} : vector<16x16xf32>, vector<16x16xf32>, vector<16x16xf32> -> vector<16x16xf32>
    %213 = vector.extract_strided_slice %156 {offsets = [32, 0], sizes = [16, 64], strides = [1, 1]} : vector<64x64xf32> to vector<16x64xf32>
    %cst_80 = arith.constant dense<0.000000e+00> : vector<16x64xf32>
    %214 = tpu.matmul %212, %213, %cst_80 {dimension_numbers = #tpu.dot_dimension_numbers<[1], [0], [0], [1], [0, 0, 1, 1], [], []>} : vector<16x16xf32>, vector<16x64xf32>, vector<16x64xf32> -> vector<16x64xf32>
    %215 = arith.addf %209, %214 : vector<16x64xf32>
    %216 = vector.extract_strided_slice %169 {offsets = [0, 176], sizes = [16, 16], strides = [1, 1]} : vector<16x192xf32> to vector<16x16xf32>
    %217 = vector.extract_strided_slice %196 {offsets = [48, 0], sizes = [16, 16], strides = [1, 1]} : vector<64x16xf32> to vector<16x16xf32>
    %cst_81 = arith.constant dense<0.000000e+00> : vector<16x16xf32>
    %218 = tpu.matmul %217, %216, %cst_81 {dimension_numbers = #tpu.dot_dimension_numbers<[1], [0], [0], [1], [0, 0, 1, 1], [], []>} : vector<16x16xf32>, vector<16x16xf32>, vector<16x16xf32> -> vector<16x16xf32>
    %219 = vector.extract_strided_slice %156 {offsets = [48, 0], sizes = [16, 64], strides = [1, 1]} : vector<64x64xf32> to vector<16x64xf32>
    %cst_82 = arith.constant dense<0.000000e+00> : vector<16x64xf32>
    %220 = tpu.matmul %218, %219, %cst_82 {dimension_numbers = #tpu.dot_dimension_numbers<[1], [0], [0], [1], [0, 0, 1, 1], [], []>} : vector<16x16xf32>, vector<16x64xf32>, vector<16x64xf32> -> vector<16x64xf32>
    %221 = arith.addf %215, %220 : vector<16x64xf32>
    %222 = vector.broadcast %160 : vector<1x64xf32> to vector<16x64xf32>
    %223 = arith.addf %221, %222 : vector<16x64xf32>
    %224 = arith.addf %154, %223 : vector<16x64xf32>
    %cst_83 = arith.constant dense<0.000000e+00> : vector<16xf32>
    %225 = vector.multi_reduction <add>, %224, %cst_83 [1] : vector<16x64xf32> to vector<16xf32>
    %226 = vector.shape_cast %225 : vector<16xf32> to vector<16x1xf32>
    %cst_84 = arith.constant 6.400000e+01 : f32
    %227 = vector.broadcast %cst_84 : f32 to vector<16x1xf32>
    %228 = arith.divf %226, %227 : vector<16x1xf32>
    %229 = vector.broadcast %228 : vector<16x1xf32> to vector<16x64xf32>
    %230 = arith.subf %224, %229 : vector<16x64xf32>
    %231 = arith.mulf %230, %230 : vector<16x64xf32>
    %cst_85 = arith.constant dense<0.000000e+00> : vector<16xf32>
    %232 = vector.multi_reduction <add>, %231, %cst_85 [1] : vector<16x64xf32> to vector<16xf32>
    %233 = vector.shape_cast %232 : vector<16xf32> to vector<16x1xf32>
    %cst_86 = arith.constant 6.400000e+01 : f32
    %234 = vector.broadcast %cst_86 : f32 to vector<16x1xf32>
    %235 = arith.divf %233, %234 : vector<16x1xf32>
    %cst_87 = arith.constant 9.99999974E-6 : f32
    %236 = vector.broadcast %cst_87 : f32 to vector<16x1xf32>
    %237 = arith.addf %235, %236 : vector<16x1xf32>
    %238 = math.rsqrt %237 : vector<16x1xf32>
    %239 = vector.broadcast %238 : vector<16x1xf32> to vector<16x64xf32>
    %240 = arith.mulf %230, %239 : vector<16x64xf32>
    %241 = vector.broadcast %161 : vector<1x64xf32> to vector<16x64xf32>
    %242 = arith.mulf %240, %241 : vector<16x64xf32>
    %243 = vector.broadcast %162 : vector<1x64xf32> to vector<16x64xf32>
    %244 = arith.addf %242, %243 : vector<16x64xf32>
    %cst_88 = arith.constant dense<0.000000e+00> : vector<16x128xf32>
    %245 = tpu.matmul %244, %157, %cst_88 {dimension_numbers = #tpu.dot_dimension_numbers<[1], [0], [0], [1], [0, 0, 1, 1], [], []>} : vector<16x64xf32>, vector<64x128xf32>, vector<16x128xf32> -> vector<16x128xf32>
    %246 = vector.broadcast %163 : vector<1x128xf32> to vector<16x128xf32>
    %247 = arith.addf %245, %246 : vector<16x128xf32>
    %cst_89 = arith.constant 0.000000e+00 : f32
    %248 = vector.broadcast %cst_89 : f32 to vector<16x128xf32>
    %249 = arith.maximumf %247, %248 : vector<16x128xf32>
    %cst_90 = arith.constant dense<0.000000e+00> : vector<16x64xf32>
    %250 = tpu.matmul %249, %158, %cst_90 {dimension_numbers = #tpu.dot_dimension_numbers<[1], [0], [0], [1], [0, 0, 1, 1], [], []>} : vector<16x128xf32>, vector<128x64xf32>, vector<16x64xf32> -> vector<16x64xf32>
    %251 = vector.broadcast %164 : vector<1x64xf32> to vector<16x64xf32>
    %252 = arith.addf %250, %251 : vector<16x64xf32>
    %253 = arith.addf %244, %252 : vector<16x64xf32>
    %cst_91 = arith.constant dense<0.000000e+00> : vector<16xf32>
    %254 = vector.multi_reduction <add>, %253, %cst_91 [1] : vector<16x64xf32> to vector<16xf32>
    %255 = vector.shape_cast %254 : vector<16xf32> to vector<16x1xf32>
    %cst_92 = arith.constant 6.400000e+01 : f32
    %256 = vector.broadcast %cst_92 : f32 to vector<16x1xf32>
    %257 = arith.divf %255, %256 : vector<16x1xf32>
    %258 = vector.broadcast %257 : vector<16x1xf32> to vector<16x64xf32>
    %259 = arith.subf %253, %258 : vector<16x64xf32>
    %260 = arith.mulf %259, %259 : vector<16x64xf32>
    %cst_93 = arith.constant dense<0.000000e+00> : vector<16xf32>
    %261 = vector.multi_reduction <add>, %260, %cst_93 [1] : vector<16x64xf32> to vector<16xf32>
    %262 = vector.shape_cast %261 : vector<16xf32> to vector<16x1xf32>
    %cst_94 = arith.constant 6.400000e+01 : f32
    %263 = vector.broadcast %cst_94 : f32 to vector<16x1xf32>
    %264 = arith.divf %262, %263 : vector<16x1xf32>
    %cst_95 = arith.constant 9.99999974E-6 : f32
    %265 = vector.broadcast %cst_95 : f32 to vector<16x1xf32>
    %266 = arith.addf %264, %265 : vector<16x1xf32>
    %267 = math.rsqrt %266 : vector<16x1xf32>
    %268 = vector.broadcast %267 : vector<16x1xf32> to vector<16x64xf32>
    %269 = arith.mulf %259, %268 : vector<16x64xf32>
    %270 = vector.broadcast %165 : vector<1x64xf32> to vector<16x64xf32>
    %271 = arith.mulf %269, %270 : vector<16x64xf32>
    %272 = vector.broadcast %166 : vector<1x64xf32> to vector<16x64xf32>
    %273 = arith.addf %271, %272 : vector<16x64xf32>
    %c656 = arith.constant 656 : index
    %c0_96 = arith.constant 0 : index
    %274 = vector.load %arg1[%c656, %c0_96] : memref<664x192xf32, #tpu.memory_space<vmem>>, vector<1x64xf32>
    %c657 = arith.constant 657 : index
    %c0_97 = arith.constant 0 : index
    %275 = vector.load %arg1[%c657, %c0_97] : memref<664x192xf32, #tpu.memory_space<vmem>>, vector<1x1xf32>
    %276 = vector.broadcast %274 : vector<1x64xf32> to vector<16x64xf32>
    %277 = arith.mulf %273, %276 : vector<16x64xf32>
    %cst_98 = arith.constant dense<0.000000e+00> : vector<16xf32>
    %278 = vector.multi_reduction <add>, %277, %cst_98 [1] : vector<16x64xf32> to vector<16xf32>
    %279 = vector.shape_cast %278 : vector<16xf32> to vector<16x1xf32>
    %280 = vector.broadcast %275 : vector<1x1xf32> to vector<16x1xf32>
    %281 = arith.addf %279, %280 : vector<16x1xf32>
    %282 = vector.shape_cast %281 : vector<16x1xf32> to vector<16x1xf32>
    %283 = vector.broadcast %282 : vector<16x1xf32> to vector<16x128xf32>
    %c0_99 = arith.constant 0 : index
    %c0_100 = arith.constant 0 : index
    %284 = vector.load %arg2[%c0_99, %c0_100] : memref<16x128xf32, #tpu.memory_space<vmem>>, vector<16x128xf32>
    tpu.vector_store %arg2[%c0_99, %c0_100], %283 {strides = array<i32>} : memref<16x128xf32, #tpu.memory_space<vmem>>, vector<16x128xf32>,
    return
  }
}

</mosaic_0001>

<llo_original>
// kernel: model_forward.1
$region0: #{model_forward.1}
  #allocation0 [shape = 'u32[]', space=smem, size = 0x4, offset = 0x4, fixed_abs, tag = 'smem constant byte address 0x4 - core index']
  #allocation1 [shape = 'u32[72,128]{1,0:T(1,128)}', space=vmem, size = 0x9000, scoped, tag = 'internal scratch']
  %s0 = inlined_call_operand.vmem [shape: f32[16,64], index: 0, kind: input, shape index: {}]
  %s1 = inlined_call_operand.vmem [shape: f32[664,192], index: 1, kind: input, shape index: {}]
  %s2 = inlined_call_operand.vmem [shape: f32[16,128], index: 2, kind: output, shape index: {}]
  %s3 = sld [smem:[#allocation0]]
  $region18: #{model_forward.1} parent=0
    _
  %s5 = ssub.s32 1, %s3
  %s6 = scalar_select 0, %s5, %s3
  // Predicated region
  $region2: #{model_forward.1} parent=0 // pred_check
    _
  $region3: #{model_forward.1} parent=0 // pred_check_branch
    %8 = sbr.rel (0) target = $region5
  $region4: #{model_forward.1} parent=0 // pred_region
    _
  $region5: #{model_forward.1} parent=0 // pred_fallthru
    _
  // Predicated region
  $region6: #{model_forward.1} parent=0 // pred_check
    _
  $region7: #{model_forward.1} parent=0 // pred_check_branch
    %10 = sbr.rel (0) target = $region9
  $region8: #{model_forward.1} parent=0 // pred_region
    _
  $region9: #{model_forward.1} parent=0 // pred_fallthru
    _
  %v11 = vld [vmem:[%s0] sm:$0xff]
  %v12 = vld [vmem:[%s0 + $0x8] sm:$0xff]
  %v13 = vlaneseq
  %v14 = vshrl.u32 %v13, 7
  %v15 = vadd.s32 %v14, 8
  %v16 = vadd.s32 %v14, 16
  %v17 = vadd.s32 %v14, 24
  %v18 = vadd.s32 %v14, 32
  %v19 = vadd.s32 %v14, 40
  %v20 = vadd.s32 %v14, 48
  %v21 = vadd.s32 %v14, 56
  %vm22 = vcmp.lt.s32.totalorder %v14, 0
  %v23 = vsub.s32 0, %v14
  %v24 = vsel %vm22, %v23, %v14
  %v25 = vshrl.u32 %v24, 3
  %v26 = vand.u32 %v24, 7
  %v27 = vsub.s32 0, %v26
  %v28 = vsel %vm22, %v27, %v26
  %vm29 = vcmp.lt.s32.totalorder %v15, 0
  %v30 = vsub.s32 0, %v15
  %v31 = vsel %vm29, %v30, %v15
  %v32 = vshrl.u32 %v31, 3
  %v33 = vand.u32 %v31, 7
  %v34 = vsub.s32 0, %v33
  %v35 = vsel %vm29, %v34, %v33
  %vm36 = vcmp.lt.s32.totalorder %v16, 0
  %v37 = vsub.s32 0, %v16
  %v38 = vsel %vm36, %v37, %v16
  %v39 = vshrl.u32 %v38, 3
  %v40 = vand.u32 %v38, 7
  %v41 = vsub.s32 0, %v40
  %v42 = vsel %vm36, %v41, %v40
  %vm43 = vcmp.lt.s32.totalorder %v17, 0
  %v44 = vsub.s32 0, %v17
  %v45 = vsel %vm43, %v44, %v17
  %v46 = vshrl.u32 %v45, 3
  %v47 = vand.u32 %v45, 7
  %v48 = vsub.s32 0, %v47
  %v49 = vsel %vm43, %v48, %v47
  %vm50 = vcmp.lt.s32.totalorder %v18, 0
  %v51 = vsub.s32 0, %v18
  %v52 = vsel %vm50, %v51, %v18
  %v53 = vshrl.u32 %v52, 3
  %v54 = vand.u32 %v52, 7
  %v55 = vsub.s32 0, %v54
  %v56 = vsel %vm50, %v55, %v54
  %vm57 = vcmp.lt.s32.totalorder %v19, 0
  %v58 = vsub.s32 0, %v19
  %v59 = vsel %vm57, %v58, %v19
  %v60 = vshrl.u32 %v59, 3
  %v61 = vand.u32 %v59, 7
  %v62 = vsub.s32 0, %v61
  %v63 = vsel %vm57, %v62, %v61
  %vm64 = vcmp.lt.s32.totalorder %v20, 0
  %v65 = vsub.s32 0, %v20
  %v66 = vsel %vm64, %v65, %v20
  %v67 = vshrl.u32 %v66, 3
  %v68 = vand.u32 %v66, 7
  %v69 = vsub.s32 0, %v68
  %v70 = vsel %vm64, %v69, %v68
  %vm71 = vcmp.lt.s32.totalorder %v21, 0
  %v72 = vsub.s32 0, %v21
  %v73 = vsel %vm71, %v72, %v21
  %v74 = vshrl.u32 %v73, 3
  %v75 = vand.u32 %v73, 7
  %v76 = vsub.s32 0, %v75
  %v77 = vsel %vm71, %v76, %v75
  %vm78 = vcmp.ne.s32.totalorder %v28, 0
  %vm79 = vcmp.ne.s32.totalorder %v35, 0
  %vm80 = vcmp.ne.s32.totalorder %v42, 0
  %vm81 = vcmp.ne.s32.totalorder %v49, 0
  %vm82 = vcmp.ne.s32.totalorder %v56, 0
  %vm83 = vcmp.ne.s32.totalorder %v63, 0
  %vm84 = vcmp.ne.s32.totalorder %v70, 0
  %vm85 = vcmp.ne.s32.totalorder %v77, 0
  %vm86 = vcmp.lt.s32.totalorder %v28, 0
  %vm87 = vcmp.lt.s32.totalorder %v35, 0
  %vm88 = vcmp.lt.s32.totalorder %v42, 0
  %vm89 = vcmp.lt.s32.totalorder %v49, 0
  %vm90 = vcmp.lt.s32.totalorder %v56, 0
  %vm91 = vcmp.lt.s32.totalorder %v63, 0
  %vm92 = vcmp.lt.s32.totalorder %v70, 0
  %vm93 = vcmp.lt.s32.totalorder %v77, 0
  %vm94 = vmand %vm86, %vm78
  %vm95 = vmand %vm87, %vm79
  %vm96 = vmand %vm88, %vm80
  %vm97 = vmand %vm89, %vm81
  %vm98 = vmand %vm90, %vm82
  %vm99 = vmand %vm91, %vm83
  %vm100 = vmand %vm92, %vm84
  %vm101 = vmand %vm93, %vm85
  %v102 = vadd.s32 %v28, 8
  %v103 = vadd.s32 %v35, 8
  %v104 = vadd.s32 %v42, 8
  %v105 = vadd.s32 %v49, 8
  %v106 = vadd.s32 %v56, 8
  %v107 = vadd.s32 %v63, 8
  %v108 = vadd.s32 %v70, 8
  %v109 = vadd.s32 %v77, 8
  %v110 = vsel %vm94, %v102, %v28
  %v111 = vsel %vm95, %v103, %v35
  %v112 = vsel %vm96, %v104, %v42
  %v113 = vsel %vm97, %v105, %v49
  %v114 = vsel %vm98, %v106, %v56
  %v115 = vsel %vm99, %v107, %v63
  %v116 = vsel %vm100, %v108, %v70
  %v117 = vsel %vm101, %v109, %v77
  %v118 = vlaneseq
  %v119 = vand.u32 %v118, 127
  %vm120 = vcmp.lt.s32.totalorder %v119, 0
  %v121 = vsub.s32 0, %v119
  %v122 = vsel %vm120, %v121, %v119
  %v123 = vshrl.u32 %v122, 3
  %v124 = vand.u32 %v122, 7
  %v125 = vsub.s32 0, %v124
  %v126 = vsel %vm120, %v125, %v124
  %vm127 = vcmp.ne.s32.totalorder %v126, 0
  %vm128 = vcmp.lt.s32.totalorder %v126, 0
  %vm129 = vmand %vm128, %vm127
  %v130 = vadd.s32 %v126, 8
  %v131 = vsel %vm129, %v130, %v126
  %vm132 = vcmp.eq.s32.totalorder %v110, %v131
  %vm133 = vcmp.eq.s32.totalorder %v111, %v131
  %vm134 = vcmp.eq.s32.totalorder %v112, %v131
  %vm135 = vcmp.eq.s32.totalorder %v113, %v131
  %vm136 = vcmp.eq.s32.totalorder %v114, %v131
  %vm137 = vcmp.eq.s32.totalorder %v115, %v131
  %vm138 = vcmp.eq.s32.totalorder %v116, %v131
  %vm139 = vcmp.eq.s32.totalorder %v117, %v131
  %v140 = vld [vmem:[%s1] sm:$0xff]
  %v141 = vld [vmem:[%s1 + $0x8] sm:$0xff]
  %v142 = vld [vmem:[%s1 + $0x10] sm:$0xff]
  %v143 = vld [vmem:[%s1 + $0x18] sm:$0xff]
  %v144 = vld [vmem:[%s1 + $0x20] sm:$0xff]
  %v145 = vld [vmem:[%s1 + $0x28] sm:$0xff]
  %v146 = vld [vmem:[%s1 + $0x30] sm:$0xff]
  %v147 = vld [vmem:[%s1 + $0x38] sm:$0xff]
  %v148 = vld [vmem:[%s1 + $0x40] sm:$0xff]
  %v149 = vld [vmem:[%s1 + $0x48] sm:$0xff]
  %v150 = vld [vmem:[%s1 + $0x50] sm:$0xff]
  %v151 = vld [vmem:[%s1 + $0x58] sm:$0xff]
  %v152 = vld [vmem:[%s1 + $0x60] sm:$0xff]
  %v153 = vld [vmem:[%s1 + $0x68] sm:$0xff]
  %v154 = vld [vmem:[%s1 + $0x70] sm:$0xff]
  %v155 = vld [vmem:[%s1 + $0x78] sm:$0xff]
  %v156 = vld [vmem:[%s1 + $0x80] sm:$0xff]
  %v157 = vld [vmem:[%s1 + $0x90] sm:$0xff]
  %v158 = vld [vmem:[%s1 + $0xa0] sm:$0xff]
  %v159 = vld [vmem:[%s1 + $0xb0] sm:$0xff]
  %v160 = vld [vmem:[%s1 + $0xc0] sm:$0xff]
  %v161 = vld [vmem:[%s1 + $0xd0] sm:$0xff]
  %v162 = vld [vmem:[%s1 + $0xe0] sm:$0xff]
  %v163 = vld [vmem:[%s1 + $0xf0] sm:$0xff]
  %v164 = vld [vmem:[%s1 + $0x100] sm:$0xff]
  %v165 = vld [vmem:[%s1 + $0x110] sm:$0xff]
  %v166 = vld [vmem:[%s1 + $0x120] sm:$0xff]
  %v167 = vld [vmem:[%s1 + $0x130] sm:$0xff]
  %v168 = vld [vmem:[%s1 + $0x140] sm:$0xff]
  %v169 = vld [vmem:[%s1 + $0x150] sm:$0xff]
  %v170 = vld [vmem:[%s1 + $0x160] sm:$0xff]
  %v171 = vld [vmem:[%s1 + $0x170] sm:$0xff]
  %v172 = vld [vmem:[%s1 + $0x180] sm:$0xff]
  %v173 = vld [vmem:[%s1 + $0x190] sm:$0xff]
  %v174 = vld [vmem:[%s1 + $0x1a0] sm:$0xff]
  %v175 = vld [vmem:[%s1 + $0x1b0] sm:$0xff]
  %v176 = vld [vmem:[%s1 + $0x1c0] sm:$0xff]
  %v177 = vld [vmem:[%s1 + $0x1d0] sm:$0xff]
  %v178 = vld [vmem:[%s1 + $0x1e0] sm:$0xff]
  %v179 = vld [vmem:[%s1 + $0x1f0] sm:$0xff]
  %v180 = vld [vmem:[%s1 + $0x200] sm:$0xff]
  %v181 = vld [vmem:[%s1 + $0x210] sm:$0xff]
  %v182 = vld [vmem:[%s1 + $0x220] sm:$0xff]
  %v183 = vld [vmem:[%s1 + $0x230] sm:$0xff]
  %v184 = vld [vmem:[%s1 + $0x240] sm:$0xff]
  %v185 = vld [vmem:[%s1 + $0x250] sm:$0xff]
  %v186 = vld [vmem:[%s1 + $0x260] sm:$0xff]
  %v187 = vld [vmem:[%s1 + $0x270] sm:$0xff]
  %s188 = scalar_lea.vmem %s1, 640
  %v189 = vld [vmem:[%s188] ss:$8 sm:$0x3]
  %v190 = vld [vmem:[%s1 + $0x281] ss:$0 sm:$0xff]
  %v191 = vld [vmem:[%s1 + $0x282] ss:$0 sm:$0xff]
  %v192 = vld [vmem:[%s1 + $0x283] ss:$0 sm:$0xff]
  %v193 = vld [vmem:[%s1 + $0x284] ss:$0 sm:$0xff]
  %v194 = vld [vmem:[%s1 + $0x285] ss:$0 sm:$0xff]
  %v195 = vld [vmem:[%s1 + $0x286] ss:$0 sm:$0xff]
  %v196 = vld [vmem:[%s1 + $0x287] ss:$0 sm:$0xff]
  %v198 = vperm.slane %v189, 0
  %v199 = vperm.slane %v189, 1
  %vm202 = vcmask 523264
  %v204 = vsel %vm202, %v11, 0
  %v207 = vsel %vm202, %v12, 0
  %209 = vmatpush.msra.mxu0 0.0
  %210 = vmatpush.msra.mxu0 0.0
  %211 = vmatpush.msra.mxu0 0.0
  %212 = vmatpush.msra.mxu0 0.0
  %213 = vmatpush.msra.mxu0 0.0
  %214 = vmatpush.msra.mxu0 0.0
  %215 = vmatpush.msra.mxu0 0.0
  %216 = vmatpush.msra.mxu0 0.0
  %217 = vmatpush.msra.mxu0 %v154
  %218 = vmatpush.msra.mxu0 %v152
  %219 = vmatpush.msra.mxu0 %v150
  %220 = vmatpush.msra.mxu0 %v148
  %221 = vmatpush.msra.mxu0 %v146
  %222 = vmatpush.msra.mxu0 %v144
  %223 = vmatpush.msra.mxu0 %v142
  %224 = vmatpush.msra.mxu0 %v140
  %225 = vmatmul.f32.gmra.mxu0 %v204
  %v226 = vpop.f32.mrf.mxu0
  %v227 = vadd.f32 %v198, %v226
  %228 = vmatmul.f32.gmra.mxu0 %v207
  %v229 = vpop.f32.mrf.mxu0
  %v230 = vadd.f32 %v198, %v229
  %231 = vdwg.mxu0
  %232 = vmatpush.msra.mxu0 0.0
  %233 = vmatpush.msra.mxu0 0.0
  %234 = vmatpush.msra.mxu0 0.0
  %235 = vmatpush.msra.mxu0 0.0
  %236 = vmatpush.msra.mxu0 0.0
  %237 = vmatpush.msra.mxu0 0.0
  %238 = vmatpush.msra.mxu0 0.0
  %239 = vmatpush.msra.mxu0 0.0
  %240 = vmatpush.msra.mxu0 %v155
  %241 = vmatpush.msra.mxu0 %v153
  %242 = vmatpush.msra.mxu0 %v151
  %243 = vmatpush.msra.mxu0 %v149
  %244 = vmatpush.msra.mxu0 %v147
  %245 = vmatpush.msra.mxu0 %v145
  %246 = vmatpush.msra.mxu0 %v143
  %247 = vmatpush.msra.mxu0 %v141
  %248 = vmatmul.f32.gmra.mxu0 %v204
  %v249 = vpop.f32.mrf.mxu0
  %v250 = vadd.f32 %v199, %v249
  %251 = vmatmul.f32.gmra.mxu0 %v207
  %v252 = vpop.f32.mrf.mxu0
  %v253 = vadd.f32 %v199, %v252
  %254 = vdwg.mxu0
  %257 = vrot.lane.b32.xlu0 %v227, 64
  %v258 = vpop.permute.xlu0 %257
  %259 = vrot.lane.b32.xlu0 %v230, 64
  %v260 = vpop.permute.xlu0 %259
  %vm261 = vcmask 130048
  %v262 = vsel %vm261, %v227, 0
  %v264 = vsel %vm261, %v230, 0
  %v266 = vsel %vm261, %v258, 0
  %v268 = vsel %vm261, %v260, 0
  %270 = vmatpush.xpose.msra.mxu0 0.0
  %271 = vmatpush.xpose.msra.mxu0 0.0
  %272 = vmatpush.xpose.msra.mxu0 0.0
  %273 = vmatpush.xpose.msra.mxu0 0.0
  %274 = vmatpush.xpose.msra.mxu0 0.0
  %275 = vmatpush.xpose.msra.mxu0 0.0
  %276 = vmatpush.xpose.msra.mxu0 0.0
  %277 = vmatpush.xpose.msra.mxu0 0.0
  %278 = vmatpush.xpose.msra.mxu0 0.0
  %279 = vmatpush.xpose.msra.mxu0 0.0
  %280 = vmatpush.xpose.msra.mxu0 0.0
  %281 = vmatpush.xpose.msra.mxu0 0.0
  %282 = vmatpush.xpose.msra.mxu0 0.0
  %283 = vmatpush.xpose.msra.mxu0 0.0
  %284 = vmatpush.xpose.msra.mxu0 %v268
  %285 = vmatpush.xpose.msra.mxu0 %v266
  %286 = vmatmul.f32.gmra.mxu0 %v262
  %v287 = vpop.f32.mrf.mxu0
  %v288 = vadd.f32 0.0, %v287
  %289 = vmatmul.f32.gmra.mxu0 %v264
  %v290 = vpop.f32.mrf.mxu0
  %v291 = vadd.f32 0.0, %v290
  %292 = vdwg.mxu0
  %293 = vrot.lane.b32.xlu0 %v227, 112
  %v294 = vpop.permute.xlu0 %293
  %295 = vrot.lane.b32.xlu0 %v230, 112
  %v296 = vpop.permute.xlu0 %295
  %297 = vrot.lane.b32.xlu0 %v227, 48
  %v298 = vpop.permute.xlu0 %297
  %299 = vrot.lane.b32.xlu0 %v230, 48
  %v300 = vpop.permute.xlu0 %299
  %v301 = vsel %vm261, %v294, 0
  %v303 = vsel %vm261, %v296, 0
  %v305 = vsel %vm261, %v298, 0
  %v307 = vsel %vm261, %v300, 0
  %309 = vmatpush.xpose.msra.mxu0 0.0
  %310 = vmatpush.xpose.msra.mxu0 0.0
  %311 = vmatpush.xpose.msra.mxu0 0.0
  %312 = vmatpush.xpose.msra.mxu0 0.0
  %313 = vmatpush.xpose.msra.mxu0 0.0
  %314 = vmatpush.xpose.msra.mxu0 0.0
  %315 = vmatpush.xpose.msra.mxu0 0.0
  %316 = vmatpush.xpose.msra.mxu0 0.0
  %317 = vmatpush.xpose.msra.mxu0 0.0
  %318 = vmatpush.xpose.msra.mxu0 0.0
  %319 = vmatpush.xpose.msra.mxu0 0.0
  %320 = vmatpush.xpose.msra.mxu0 0.0
  %321 = vmatpush.xpose.msra.mxu0 0.0
  %322 = vmatpush.xpose.msra.mxu0 0.0
  %323 = vmatpush.xpose.msra.mxu0 %v307
  %324 = vmatpush.xpose.msra.mxu0 %v305
  %325 = vmatmul.f32.gmra.mxu0 %v301
  %v326 = vpop.f32.mrf.mxu0
  %v327 = vadd.f32 0.0, %v326
  %328 = vmatmul.f32.gmra.mxu0 %v303
  %v329 = vpop.f32.mrf.mxu0
  %v330 = vadd.f32 0.0, %v329
  %331 = vdwg.mxu0
  %332 = vrot.lane.b32.xlu0 %v227, 96
  %v333 = vpop.permute.xlu0 %332
  %334 = vrot.lane.b32.xlu0 %v230, 96
  %v335 = vpop.permute.xlu0 %334
  %336 = vrot.lane.b32.xlu0 %v227, 32
  %v337 = vpop.permute.xlu0 %336
  %338 = vrot.lane.b32.xlu0 %v230, 32
  %v339 = vpop.permute.xlu0 %338
  %v340 = vsel %vm261, %v333, 0
  %v342 = vsel %vm261, %v335, 0
  %v344 = vsel %vm261, %v337, 0
  %v346 = vsel %vm261, %v339, 0
  %348 = vmatpush.xpose.msra.mxu0 0.0
  %349 = vmatpush.xpose.msra.mxu0 0.0
  %350 = vmatpush.xpose.msra.mxu0 0.0
  %351 = vmatpush.xpose.msra.mxu0 0.0
  %352 = vmatpush.xpose.msra.mxu0 0.0
  %353 = vmatpush.xpose.msra.mxu0 0.0
  %354 = vmatpush.xpose.msra.mxu0 0.0
  %355 = vmatpush.xpose.msra.mxu0 0.0
  %356 = vmatpush.xpose.msra.mxu0 0.0
  %357 = vmatpush.xpose.msra.mxu0 0.0
  %358 = vmatpush.xpose.msra.mxu0 0.0
  %359 = vmatpush.xpose.msra.mxu0 0.0
  %360 = vmatpush.xpose.msra.mxu0 0.0
  %361 = vmatpush.xpose.msra.mxu0 0.0
  %362 = vmatpush.xpose.msra.mxu0 %v346
  %363 = vmatpush.xpose.msra.mxu0 %v344
  %364 = vmatmul.f32.gmra.mxu0 %v340
  %v365 = vpop.f32.mrf.mxu0
  %v366 = vadd.f32 0.0, %v365
  %367 = vmatmul.f32.gmra.mxu0 %v342
  %v368 = vpop.f32.mrf.mxu0
  %v369 = vadd.f32 0.0, %v368
  %370 = vdwg.mxu0
  %371 = vrot.lane.b32.xlu0 %v227, 80
  %v372 = vpop.permute.xlu0 %371
  %373 = vrot.lane.b32.xlu0 %v230, 80
  %v374 = vpop.permute.xlu0 %373
  %375 = vrot.lane.b32.xlu0 %v227, 16
  %v376 = vpop.permute.xlu0 %375
  %377 = vrot.lane.b32.xlu0 %v230, 16
  %v378 = vpop.permute.xlu0 %377
  %v379 = vsel %vm261, %v372, 0
  %v381 = vsel %vm261, %v374, 0
  %v383 = vsel %vm261, %v376, 0
  %v385 = vsel %vm261, %v378, 0
  %387 = vmatpush.xpose.msra.mxu0 0.0
  %388 = vmatpush.xpose.msra.mxu0 0.0
  %389 = vmatpush.xpose.msra.mxu0 0.0
  %390 = vmatpush.xpose.msra.mxu0 0.0
  %391 = vmatpush.xpose.msra.mxu0 0.0
  %392 = vmatpush.xpose.msra.mxu0 0.0
  %393 = vmatpush.xpose.msra.mxu0 0.0
  %394 = vmatpush.xpose.msra.mxu0 0.0
  %395 = vmatpush.xpose.msra.mxu0 0.0
  %396 = vmatpush.xpose.msra.mxu0 0.0
  %397 = vmatpush.xpose.msra.mxu0 0.0
  %398 = vmatpush.xpose.msra.mxu0 0.0
  %399 = vmatpush.xpose.msra.mxu0 0.0
  %400 = vmatpush.xpose.msra.mxu0 0.0
  %401 = vmatpush.xpose.msra.mxu0 %v385
  %402 = vmatpush.xpose.msra.mxu0 %v383
  %403 = vmatmul.f32.gmra.mxu0 %v379
  %v404 = vpop.f32.mrf.mxu0
  %v405 = vadd.f32 0.0, %v404
  %406 = vmatmul.f32.gmra.mxu0 %v381
  %v407 = vpop.f32.mrf.mxu0
  %v408 = vadd.f32 0.0, %v407
  %409 = vdwg.mxu0
  %v410 = vmul.f32 %v288, 0.25
  %v411 = vmul.f32 %v291, 0.25
  %v412 = vmul.f32 %v327, 0.25
  %v413 = vmul.f32 %v330, 0.25
  %v414 = vmul.f32 %v366, 0.25
  %v415 = vmul.f32 %v369, 0.25
  %v416 = vmul.f32 %v405, 0.25
  %v417 = vmul.f32 %v408, 0.25
  %v418 = vsel %vm132, %v410, -1e+30
  %v419 = vsel %vm133, %v411, -1e+30
  %v420 = vsel %vm134, %v412, -1e+30
  %v421 = vsel %vm135, %v413, -1e+30
  %v422 = vsel %vm136, %v414, -1e+30
  %v423 = vsel %vm137, %v415, -1e+30
  %v424 = vsel %vm138, %v416, -1e+30
  %v425 = vsel %vm139, %v417, -1e+30
  %v426 = vsel %vm261, %v418, -inf
  %427 = vmax.xlane.f32.xlu0 %v426
  %v428 = vpop.xlane.xlu0 %427
  %v429 = vsel %vm261, %v419, -inf
  %430 = vmax.xlane.f32.xlu0 %v429
  %v431 = vpop.xlane.xlu0 %430
  %v432 = vsel %vm261, %v420, -inf
  %433 = vmax.xlane.f32.xlu0 %v432
  %v434 = vpop.xlane.xlu0 %433
  %v435 = vsel %vm261, %v421, -inf
  %436 = vmax.xlane.f32.xlu0 %v435
  %v437 = vpop.xlane.xlu0 %436
  %v438 = vsel %vm261, %v422, -inf
  %439 = vmax.xlane.f32.xlu0 %v438
  %v440 = vpop.xlane.xlu0 %439
  %v441 = vsel %vm261, %v423, -inf
  %442 = vmax.xlane.f32.xlu0 %v441
  %v443 = vpop.xlane.xlu0 %442
  %v444 = vsel %vm261, %v424, -inf
  %445 = vmax.xlane.f32.xlu0 %v444
  %v446 = vpop.xlane.xlu0 %445
  %v447 = vsel %vm261, %v425, -inf
  %448 = vmax.xlane.f32.xlu0 %v447
  %v449 = vpop.xlane.xlu0 %448
  %v450 = vsub.f32 %v418, %v428
  %v451 = vsub.f32 %v419, %v431
  %v452 = vsub.f32 %v420, %v434
  %v453 = vsub.f32 %v421, %v437
  %v454 = vsub.f32 %v422, %v440
  %v455 = vsub.f32 %v423, %v443
  %v456 = vsub.f32 %v424, %v446
  %v457 = vsub.f32 %v425, %v449
  %v458 = vmul.f32 %v450, 1.442695
  %v459 = vpow.pop %v458
  %v460 = vmul.f32 %v451, 1.442695
  %v461 = vpow.pop %v460
  %v462 = vmul.f32 %v452, 1.442695
  %v463 = vpow.pop %v462
  %v464 = vmul.f32 %v453, 1.442695
  %v465 = vpow.pop %v464
  %v466 = vmul.f32 %v454, 1.442695
  %v467 = vpow.pop %v466
  %v468 = vmul.f32 %v455, 1.442695
  %v469 = vpow.pop %v468
  %v470 = vmul.f32 %v456, 1.442695
  %v471 = vpow.pop %v470
  %v472 = vmul.f32 %v457, 1.442695
  %v473 = vpow.pop %v472
  %v474 = vsel %vm261, %v459, 0.0
  %475 = vadd.xlane.f32.xlu0 %v474
  %v476 = vpop.xlane.xlu0 %475
  %v477 = vsel %vm261, %v461, 0.0
  %478 = vadd.xlane.f32.xlu0 %v477
  %v479 = vpop.xlane.xlu0 %478
  %v480 = vsel %vm261, %v463, 0.0
  %481 = vadd.xlane.f32.xlu0 %v480
  %v482 = vpop.xlane.xlu0 %481
  %v483 = vsel %vm261, %v465, 0.0
  %484 = vadd.xlane.f32.xlu0 %v483
  %v485 = vpop.xlane.xlu0 %484
  %v486 = vsel %vm261, %v467, 0.0
  %487 = vadd.xlane.f32.xlu0 %v486
  %v488 = vpop.xlane.xlu0 %487
  %v489 = vsel %vm261, %v469, 0.0
  %490 = vadd.xlane.f32.xlu0 %v489
  %v491 = vpop.xlane.xlu0 %490
  %v492 = vsel %vm261, %v471, 0.0
  %493 = vadd.xlane.f32.xlu0 %v492
  %v494 = vpop.xlane.xlu0 %493
  %v495 = vsel %vm261, %v473, 0.0
  %496 = vadd.xlane.f32.xlu0 %v495
  %v497 = vpop.xlane.xlu0 %496
  %v498 = vrcp.pop %v476
  %v499 = vrcp.pop %v479
  %v500 = vrcp.pop %v482
  %v501 = vrcp.pop %v485
  %v502 = vrcp.pop %v488
  %v503 = vrcp.pop %v491
  %v504 = vrcp.pop %v494
  %v505 = vrcp.pop %v497
  %v506 = vmul.f32 %v459, %v498
  %v507 = vmul.f32 %v461, %v499
  %v508 = vmul.f32 %v463, %v500
  %v509 = vmul.f32 %v465, %v501
  %v510 = vmul.f32 %v467, %v502
  %v511 = vmul.f32 %v469, %v503
  %v512 = vmul.f32 %v471, %v504
  %v513 = vmul.f32 %v473, %v505
  %v515 = vsel %vm261, %v506, 0
  %v518 = vsel %vm261, %v507, 0
  %520 = vmatpush.msra.mxu0 0.0
  %521 = vmatpush.msra.mxu0 0.0
  %522 = vmatpush.msra.mxu0 0.0
  %523 = vmatpush.msra.mxu0 0.0
  %524 = vmatpush.msra.mxu0 0.0
  %525 = vmatpush.msra.mxu0 0.0
  %526 = vmatpush.msra.mxu0 0.0
  %527 = vmatpush.msra.mxu0 0.0
  %528 = vmatpush.msra.mxu0 0.0
  %529 = vmatpush.msra.mxu0 0.0
  %530 = vmatpush.msra.mxu0 0.0
  %531 = vmatpush.msra.mxu0 0.0
  %532 = vmatpush.msra.mxu0 0.0
  %533 = vmatpush.msra.mxu0 0.0
  %534 = vmatpush.msra.mxu0 %v253
  %535 = vmatpush.msra.mxu0 %v250
  %536 = vmatmul.f32.gmra.mxu0 %v515
  %v537 = vpop.f32.mrf.mxu0
  %v538 = vadd.f32 0.0, %v537
  %539 = vmatmul.f32.gmra.mxu0 %v518
  %v540 = vpop.f32.mrf.mxu0
  %v541 = vadd.f32 0.0, %v540
  %542 = vdwg.mxu0
  %545 = vrot.lane.b32.xlu0 %v250, 112
  %v546 = vpop.permute.xlu0 %545
  %547 = vrot.lane.b32.xlu0 %v253, 112
  %v548 = vpop.permute.xlu0 %547
  %v552 = vsel %vm261, %v508, 0
  %v555 = vsel %vm261, %v509, 0
  %557 = vmatpush.msra.mxu0 0.0
  %558 = vmatpush.msra.mxu0 0.0
  %559 = vmatpush.msra.mxu0 0.0
  %560 = vmatpush.msra.mxu0 0.0
  %561 = vmatpush.msra.mxu0 0.0
  %562 = vmatpush.msra.mxu0 0.0
  %563 = vmatpush.msra.mxu0 0.0
  %564 = vmatpush.msra.mxu0 0.0
  %565 = vmatpush.msra.mxu0 0.0
  %566 = vmatpush.msra.mxu0 0.0
  %567 = vmatpush.msra.mxu0 0.0
  %568 = vmatpush.msra.mxu0 0.0
  %569 = vmatpush.msra.mxu0 0.0
  %570 = vmatpush.msra.mxu0 0.0
  %571 = vmatpush.msra.mxu0 %v548
  %572 = vmatpush.msra.mxu0 %v546
  %573 = vmatmul.f32.gmra.mxu0 %v552
  %v574 = vpop.f32.mrf.mxu0
  %v575 = vadd.f32 0.0, %v574
  %576 = vmatmul.f32.gmra.mxu0 %v555
  %v577 = vpop.f32.mrf.mxu0
  %v578 = vadd.f32 0.0, %v577
  %579 = vdwg.mxu0
  %v581 = vsel %vm261, %v575, 0
  %v584 = vsel %vm261, %v578, 0
  %586 = vmatpush.msra.mxu0 0.0
  %587 = vmatpush.msra.mxu0 0.0
  %588 = vmatpush.msra.mxu0 0.0
  %589 = vmatpush.msra.mxu0 0.0
  %590 = vmatpush.msra.mxu0 0.0
  %591 = vmatpush.msra.mxu0 0.0
  %592 = vmatpush.msra.mxu0 0.0
  %593 = vmatpush.msra.mxu0 0.0
  %594 = vmatpush.msra.mxu0 0.0
  %595 = vmatpush.msra.mxu0 0.0
  %596 = vmatpush.msra.mxu0 0.0
  %597 = vmatpush.msra.mxu0 0.0
  %598 = vmatpush.msra.mxu0 0.0
  %599 = vmatpush.msra.mxu0 0.0
  %600 = vmatpush.msra.mxu0 %v159
  %601 = vmatpush.msra.mxu0 %v158
  %602 = vmatmul.f32.gmra.mxu0 %v581
  %v603 = vpop.f32.mrf.mxu0
  %v604 = vadd.f32 0.0, %v603
  %605 = vmatmul.f32.gmra.mxu0 %v584
  %v606 = vpop.f32.mrf.mxu0
  %v607 = vadd.f32 0.0, %v606
  %608 = vdwg.mxu0
  %v610 = vsel %vm261, %v538, 0
  %v613 = vsel %vm261, %v541, 0
  %615 = vmatpush.msra.mxu0 0.0
  %616 = vmatpush.msra.mxu0 0.0
  %617 = vmatpush.msra.mxu0 0.0
  %618 = vmatpush.msra.mxu0 0.0
  %619 = vmatpush.msra.mxu0 0.0
  %620 = vmatpush.msra.mxu0 0.0
  %621 = vmatpush.msra.mxu0 0.0
  %622 = vmatpush.msra.mxu0 0.0
  %623 = vmatpush.msra.mxu0 0.0
  %624 = vmatpush.msra.mxu0 0.0
  %625 = vmatpush.msra.mxu0 0.0
  %626 = vmatpush.msra.mxu0 0.0
  %627 = vmatpush.msra.mxu0 0.0
  %628 = vmatpush.msra.mxu0 0.0
  %629 = vmatpush.msra.mxu0 %v157
  %630 = vmatpush.msra.mxu0 %v156
  %631 = vmatmul.f32.gmra.mxu0 %v610
  %v632 = vpop.f32.mrf.mxu0
  %v633 = vadd.f32 %v604, %v632
  %634 = vmatmul.f32.gmra.mxu0 %v613
  %v635 = vpop.f32.mrf.mxu0
  %v636 = vadd.f32 %v607, %v635
  %637 = vdwg.mxu0
  %638 = vrot.lane.b32.xlu0 %v250, 96
  %v639 = vpop.permute.xlu0 %638
  %640 = vrot.lane.b32.xlu0 %v253, 96
  %v641 = vpop.permute.xlu0 %640
  %v645 = vsel %vm261, %v510, 0
  %v648 = vsel %vm261, %v511, 0
  %650 = vmatpush.msra.mxu0 0.0
  %651 = vmatpush.msra.mxu0 0.0
  %652 = vmatpush.msra.mxu0 0.0
  %653 = vmatpush.msra.mxu0 0.0
  %654 = vmatpush.msra.mxu0 0.0
  %655 = vmatpush.msra.mxu0 0.0
  %656 = vmatpush.msra.mxu0 0.0
  %657 = vmatpush.msra.mxu0 0.0
  %658 = vmatpush.msra.mxu0 0.0
  %659 = vmatpush.msra.mxu0 0.0
  %660 = vmatpush.msra.mxu0 0.0
  %661 = vmatpush.msra.mxu0 0.0
  %662 = vmatpush.msra.mxu0 0.0
  %663 = vmatpush.msra.mxu0 0.0
  %664 = vmatpush.msra.mxu0 %v641
  %665 = vmatpush.msra.mxu0 %v639
  %666 = vmatmul.f32.gmra.mxu0 %v645
  %v667 = vpop.f32.mrf.mxu0
  %v668 = vadd.f32 0.0, %v667
  %669 = vmatmul.f32.gmra.mxu0 %v648
  %v670 = vpop.f32.mrf.mxu0
  %v671 = vadd.f32 0.0, %v670
  %672 = vdwg.mxu0
  %v674 = vsel %vm261, %v668, 0
  %v677 = vsel %vm261, %v671, 0
  %679 = vmatpush.msra.mxu0 0.0
  %680 = vmatpush.msra.mxu0 0.0
  %681 = vmatpush.msra.mxu0 0.0
  %682 = vmatpush.msra.mxu0 0.0
  %683 = vmatpush.msra.mxu0 0.0
  %684 = vmatpush.msra.mxu0 0.0
  %685 = vmatpush.msra.mxu0 0.0
  %686 = vmatpush.msra.mxu0 0.0
  %687 = vmatpush.msra.mxu0 0.0
  %688 = vmatpush.msra.mxu0 0.0
  %689 = vmatpush.msra.mxu0 0.0
  %690 = vmatpush.msra.mxu0 0.0
  %691 = vmatpush.msra.mxu0 0.0
  %692 = vmatpush.msra.mxu0 0.0
  %693 = vmatpush.msra.mxu0 %v161
  %694 = vmatpush.msra.mxu0 %v160
  %695 = vmatmul.f32.gmra.mxu0 %v674
  %v696 = vpop.f32.mrf.mxu0
  %v697 = vadd.f32 0.0, %v696
  %698 = vmatmul.f32.gmra.mxu0 %v677
  %v699 = vpop.f32.mrf.mxu0
  %v700 = vadd.f32 0.0, %v699
  %701 = vdwg.mxu0
  %v702 = vadd.f32 %v633, %v697
  %v703 = vadd.f32 %v636, %v700
  %704 = vrot.lane.b32.xlu0 %v250, 80
  %v705 = vpop.permute.xlu0 %704
  %706 = vrot.lane.b32.xlu0 %v253, 80
  %v707 = vpop.permute.xlu0 %706
  %v711 = vsel %vm261, %v512, 0
  %v714 = vsel %vm261, %v513, 0
  %716 = vmatpush.msra.mxu0 0.0
  %717 = vmatpush.msra.mxu0 0.0
  %718 = vmatpush.msra.mxu0 0.0
  %719 = vmatpush.msra.mxu0 0.0
  %720 = vmatpush.msra.mxu0 0.0
  %721 = vmatpush.msra.mxu0 0.0
  %722 = vmatpush.msra.mxu0 0.0
  %723 = vmatpush.msra.mxu0 0.0
  %724 = vmatpush.msra.mxu0 0.0
  %725 = vmatpush.msra.mxu0 0.0
  %726 = vmatpush.msra.mxu0 0.0
  %727 = vmatpush.msra.mxu0 0.0
  %728 = vmatpush.msra.mxu0 0.0
  %729 = vmatpush.msra.mxu0 0.0
  %730 = vmatpush.msra.mxu0 %v707
  %731 = vmatpush.msra.mxu0 %v705
  %732 = vmatmul.f32.gmra.mxu0 %v711
  %v733 = vpop.f32.mrf.mxu0
  %v734 = vadd.f32 0.0, %v733
  %735 = vmatmul.f32.gmra.mxu0 %v714
  %v736 = vpop.f32.mrf.mxu0
  %v737 = vadd.f32 0.0, %v736
  %738 = vdwg.mxu0
  %v740 = vsel %vm261, %v734, 0
  %v743 = vsel %vm261, %v737, 0
  %745 = vmatpush.msra.mxu0 0.0
  %746 = vmatpush.msra.mxu0 0.0
  %747 = vmatpush.msra.mxu0 0.0
  %748 = vmatpush.msra.mxu0 0.0
  %749 = vmatpush.msra.mxu0 0.0
  %750 = vmatpush.msra.mxu0 0.0
  %751 = vmatpush.msra.mxu0 0.0
  %752 = vmatpush.msra.mxu0 0.0
  %753 = vmatpush.msra.mxu0 0.0
  %754 = vmatpush.msra.mxu0 0.0
  %755 = vmatpush.msra.mxu0 0.0
  %756 = vmatpush.msra.mxu0 0.0
  %757 = vmatpush.msra.mxu0 0.0
  %758 = vmatpush.msra.mxu0 0.0
  %759 = vmatpush.msra.mxu0 %v163
  %760 = vmatpush.msra.mxu0 %v162
  %761 = vmatmul.f32.gmra.mxu0 %v740
  %v762 = vpop.f32.mrf.mxu0
  %v763 = vadd.f32 0.0, %v762
  %764 = vmatmul.f32.gmra.mxu0 %v743
  %v765 = vpop.f32.mrf.mxu0
  %v766 = vadd.f32 0.0, %v765
  %767 = vdwg.mxu0
  %v768 = vadd.f32 %v702, %v763
  %v769 = vadd.f32 %v703, %v766
  %v770 = vadd.f32 %v768, %v190
  %v771 = vadd.f32 %v769, %v190
  %v772 = vadd.f32 %v11, %v770
  %v773 = vadd.f32 %v12, %v771
  %v774 = vsel %vm202, %v772, 0.0
  %775 = vadd.xlane.f32.xlu0 %v774
  %v776 = vpop.xlane.xlu0 %775
  %v777 = vsel %vm202, %v773, 0.0
  %778 = vadd.xlane.f32.xlu0 %v777
  %v779 = vpop.xlane.xlu0 %778
  %v780 = vrcp.pop 64.0
  %v781 = vmul.f32 64.0, %v780
  %v782 = vsub.f32 1.0, %v781
  %v783 = vmul.f32 %v780, %v782
  %v784 = vadd.f32 %v780, %v783
  %vm785 = vweird.f32 %v780
  %v786 = vsel %vm785, %v780, %v784
  %v787 = vmul.f32 %v776, %v786
  %v788 = vmul.f32 %v779, %v786
  %v789 = vsub.f32 %v772, %v787
  %v790 = vsub.f32 %v773, %v788
  %v791 = vmul.f32 %v789, %v789
  %v792 = vmul.f32 %v790, %v790
  %v793 = vsel %vm202, %v791, 0.0
  %794 = vadd.xlane.f32.xlu0 %v793
  %v795 = vpop.xlane.xlu0 %794
  %v796 = vsel %vm202, %v792, 0.0
  %797 = vadd.xlane.f32.xlu0 %v796
  %v798 = vpop.xlane.xlu0 %797
  %v799 = vmul.f32 %v795, %v786
  %v800 = vmul.f32 %v798, %v786
  %v801 = vadd.f32 %v799, 1e-05
  %v802 = vadd.f32 %v800, 1e-05
  %v803 = vrsqrt.pop %v801
  %v804 = vmul.f32 %v803, %v801
  %v805 = vmul.f32 %v804, %v803
  %v806 = vmul.f32 0.5, %v805
  %v807 = vsub.f32 1.5, %v806
  %v808 = vmul.f32 %v803, %v807
  %vm809 = vweird.f32 %v801
  %vm810 = vweird.f32 %v803
  %vm811 = vmor %vm809, %vm810
  %v812 = vsel %vm811, %v803, %v808
  %v813 = vrsqrt.pop %v802
  %v814 = vmul.f32 %v813, %v802
  %v815 = vmul.f32 %v814, %v813
  %v816 = vmul.f32 0.5, %v815
  %v817 = vsub.f32 1.5, %v816
  %v818 = vmul.f32 %v813, %v817
  %vm819 = vweird.f32 %v802
  %vm820 = vweird.f32 %v813
  %vm821 = vmor %vm819, %vm820
  %v822 = vsel %vm821, %v813, %v818
  %v823 = vmul.f32 %v789, %v812
  %v824 = vmul.f32 %v790, %v822
  %v825 = vmul.f32 %v823, %v191
  %v826 = vmul.f32 %v824, %v191
  %v827 = vadd.f32 %v825, %v192
  %v828 = vadd.f32 %v826, %v192
  %v830 = vsel %vm202, %v827, 0
  %v833 = vsel %vm202, %v828, 0
  %835 = vmatpush.msra.mxu0 0.0
  %836 = vmatpush.msra.mxu0 0.0
  %837 = vmatpush.msra.mxu0 0.0
  %838 = vmatpush.msra.mxu0 0.0
  %839 = vmatpush.msra.mxu0 0.0
  %840 = vmatpush.msra.mxu0 0.0
  %841 = vmatpush.msra.mxu0 0.0
  %842 = vmatpush.msra.mxu0 0.0
  %843 = vmatpush.msra.mxu0 %v171
  %844 = vmatpush.msra.mxu0 %v170
  %845 = vmatpush.msra.mxu0 %v169
  %846 = vmatpush.msra.mxu0 %v168
  %847 = vmatpush.msra.mxu0 %v167
  %848 = vmatpush.msra.mxu0 %v166
  %849 = vmatpush.msra.mxu0 %v165
  %850 = vmatpush.msra.mxu0 %v164
  %851 = vmatmul.f32.gmra.mxu0 %v830
  %v852 = vpop.f32.mrf.mxu0
  %v853 = vadd.f32 %v193, %v852
  %854 = vmatmul.f32.gmra.mxu0 %v833
  %v855 = vpop.f32.mrf.mxu0
  %v856 = vadd.f32 %v193, %v855
  %857 = vdwg.mxu0
  %v858 = vmax.f32 %v853, 0.0
  %v859 = vmax.f32 %v856, 0.0
  %860 = vmatpush.msra.mxu0 %v187
  %861 = vmatpush.msra.mxu0 %v186
  %862 = vmatpush.msra.mxu0 %v185
  %863 = vmatpush.msra.mxu0 %v184
  %864 = vmatpush.msra.mxu0 %v183
  %865 = vmatpush.msra.mxu0 %v182
  %866 = vmatpush.msra.mxu0 %v181
  %867 = vmatpush.msra.mxu0 %v180
  %868 = vmatpush.msra.mxu0 %v179
  %869 = vmatpush.msra.mxu0 %v178
  %870 = vmatpush.msra.mxu0 %v177
  %871 = vmatpush.msra.mxu0 %v176
  %872 = vmatpush.msra.mxu0 %v175
  %873 = vmatpush.msra.mxu0 %v174
  %874 = vmatpush.msra.mxu0 %v173
  %875 = vmatpush.msra.mxu0 %v172
  %876 = vmatmul.f32.gmra.mxu0 %v858
  %v877 = vpop.f32.mrf.mxu0
  %v878 = vadd.f32 %v194, %v877
  %879 = vmatmul.f32.gmra.mxu0 %v859
  %v880 = vpop.f32.mrf.mxu0
  %v881 = vadd.f32 %v194, %v880
  %882 = vdwg.mxu0
  %v883 = vadd.f32 %v827, %v878
  %v884 = vadd.f32 %v828, %v881
  %v885 = vsel %vm202, %v883, 0.0
  %886 = vadd.xlane.f32.xlu0 %v885
  %v887 = vpop.xlane.xlu0 %886
  %v888 = vsel %vm202, %v884, 0.0
  %889 = vadd.xlane.f32.xlu0 %v888
  %v890 = vpop.xlane.xlu0 %889
  %v891 = vmul.f32 %v887, %v786
  %v892 = vmul.f32 %v890, %v786
  %v893 = vsub.f32 %v883, %v891
  %v894 = vsub.f32 %v884, %v892
  %v895 = vmul.f32 %v893, %v893
  %v896 = vmul.f32 %v894, %v894
  %v897 = vsel %vm202, %v895, 0.0
  %898 = vadd.xlane.f32.xlu0 %v897
  %v899 = vpop.xlane.xlu0 %898
  %v900 = vsel %vm202, %v896, 0.0
  %901 = vadd.xlane.f32.xlu0 %v900
  %v902 = vpop.xlane.xlu0 %901
  %v903 = vmul.f32 %v899, %v786
  %v904 = vmul.f32 %v902, %v786
  %v905 = vadd.f32 %v903, 1e-05
  %v906 = vadd.f32 %v904, 1e-05
  %v907 = vrsqrt.pop %v905
  %v908 = vmul.f32 %v907, %v905
  %v909 = vmul.f32 %v908, %v907
  %v910 = vmul.f32 0.5, %v909
  %v911 = vsub.f32 1.5, %v910
  %v912 = vmul.f32 %v907, %v911
  %vm913 = vweird.f32 %v905
  %vm914 = vweird.f32 %v907
  %vm915 = vmor %vm913, %vm914
  %v916 = vsel %vm915, %v907, %v912
  %v917 = vrsqrt.pop %v906
  %v918 = vmul.f32 %v917, %v906
  %v919 = vmul.f32 %v918, %v917
  %v920 = vmul.f32 0.5, %v919
  %v921 = vsub.f32 1.5, %v920
  %v922 = vmul.f32 %v917, %v921
  %vm923 = vweird.f32 %v906
  %vm924 = vweird.f32 %v917
  %vm925 = vmor %vm923, %vm924
  %v926 = vsel %vm925, %v917, %v922
  %v927 = vmul.f32 %v893, %v916
  %v928 = vmul.f32 %v894, %v926
  %v929 = vmul.f32 %v927, %v195
  %v930 = vmul.f32 %v928, %v195
  %v931 = vadd.f32 %v929, %v196
  %v932 = vadd.f32 %v930, %v196
  %v933 = vld [vmem:[%s1 + $0x290] sm:$0xff]
  %v934 = vld [vmem:[%s1 + $0x298] sm:$0xff]
  %v935 = vld [vmem:[%s1 + $0x2a0] sm:$0xff]
  %v936 = vld [vmem:[%s1 + $0x2a8] sm:$0xff]
  %v937 = vld [vmem:[%s1 + $0x2b0] sm:$0xff]
  %v938 = vld [vmem:[%s1 + $0x2b8] sm:$0xff]
  %v939 = vld [vmem:[%s1 + $0x2c0] sm:$0xff]
  %v940 = vld [vmem:[%s1 + $0x2c8] sm:$0xff]
  %v941 = vld [vmem:[%s1 + $0x2d0] sm:$0xff]
  %v942 = vld [vmem:[%s1 + $0x2d8] sm:$0xff]
  %v943 = vld [vmem:[%s1 + $0x2e0] sm:$0xff]
  %v944 = vld [vmem:[%s1 + $0x2e8] sm:$0xff]
  %v945 = vld [vmem:[%s1 + $0x2f0] sm:$0xff]
  %v946 = vld [vmem:[%s1 + $0x2f8] sm:$0xff]
  %v947 = vld [vmem:[%s1 + $0x300] sm:$0xff]
  %v948 = vld [vmem:[%s1 + $0x308] sm:$0xff]
  %v949 = vld [vmem:[%s1 + $0x310] sm:$0xff]
  %v950 = vld [vmem:[%s1 + $0x320] sm:$0xff]
  %v951 = vld [vmem:[%s1 + $0x330] sm:$0xff]
  %v952 = vld [vmem:[%s1 + $0x340] sm:$0xff]
  %v953 = vld [vmem:[%s1 + $0x350] sm:$0xff]
  %v954 = vld [vmem:[%s1 + $0x360] sm:$0xff]
  %v955 = vld [vmem:[%s1 + $0x370] sm:$0xff]
  %v956 = vld [vmem:[%s1 + $0x380] sm:$0xff]
  %v957 = vld [vmem:[%s1 + $0x390] sm:$0xff]
  %v958 = vld [vmem:[%s1 + $0x3a0] sm:$0xff]
  %v959 = vld [vmem:[%s1 + $0x3b0] sm:$0xff]
  %v960 = vld [vmem:[%s1 + $0x3c0] sm:$0xff]
  %v961 = vld [vmem:[%s1 + $0x3d0] sm:$0xff]
  %v962 = vld [vmem:[%s1 + $0x3e0] sm:$0xff]
  %v963 = vld [vmem:[%s1 + $0x3f0] sm:$0xff]
  %v964 = vld [vmem:[%s1 + $0x400] sm:$0xff]
  %v965 = vld [vmem:[%s1 + $0x410] sm:$0xff]
  %v966 = vld [vmem:[%s1 + $0x420] sm:$0xff]
  %v967 = vld [vmem:[%s1 + $0x430] sm:$0xff]
  %v968 = vld [vmem:[%s1 + $0x440] sm:$0xff]
  %v969 = vld [vmem:[%s1 + $0x450] sm:$0xff]
  %v970 = vld [vmem:[%s1 + $0x460] sm:$0xff]
  %v971 = vld [vmem:[%s1 + $0x470] sm:$0xff]
  %v972 = vld [vmem:[%s1 + $0x480] sm:$0xff]
  %v973 = vld [vmem:[%s1 + $0x490] sm:$0xff]
  %v974 = vld [vmem:[%s1 + $0x4a0] sm:$0xff]
  %v975 = vld [vmem:[%s1 + $0x4b0] sm:$0xff]
  %v976 = vld [vmem:[%s1 + $0x4c0] sm:$0xff]
  %v977 = vld [vmem:[%s1 + $0x4d0] sm:$0xff]
  %v978 = vld [vmem:[%s1 + $0x4e0] sm:$0xff]
  %v979 = vld [vmem:[%s1 + $0x4f0] sm:$0xff]
  %v980 = vld [vmem:[%s1 + $0x500] sm:$0xff]
  %s981 = scalar_lea.vmem %s1, 1296
  %v982 = vld [vmem:[%s981] ss:$8 sm:$0x3]
  %v983 = vld [vmem:[%s1 + $0x511] ss:$0 sm:$0xff]
  %v984 = vld [vmem:[%s1 + $0x512] ss:$0 sm:$0xff]
  %v985 = vld [vmem:[%s1 + $0x513] ss:$0 sm:$0xff]
  %v986 = vld [vmem:[%s1 + $0x514] ss:$0 sm:$0xff]
  %v987 = vld [vmem:[%s1 + $0x515] ss:$0 sm:$0xff]
  %v988 = vld [vmem:[%s1 + $0x516] ss:$0 sm:$0xff]
  %v989 = vld [vmem:[%s1 + $0x517] ss:$0 sm:$0xff]
  %v991 = vperm.slane %v982, 0
  %v992 = vperm.slane %v982, 1
  %v996 = vsel %vm202, %v931, 0
  %v999 = vsel %vm202, %v932, 0
  %1001 = vmatpush.msra.mxu0 0.0
  %1002 = vmatpush.msra.mxu0 0.0
  %1003 = vmatpush.msra.mxu0 0.0
  %1004 = vmatpush.msra.mxu0 0.0
  %1005 = vmatpush.msra.mxu0 0.0
  %1006 = vmatpush.msra.mxu0 0.0
  %1007 = vmatpush.msra.mxu0 0.0
  %1008 = vmatpush.msra.mxu0 0.0
  %1009 = vmatpush.msra.mxu0 %v947
  %1010 = vmatpush.msra.mxu0 %v945
  %1011 = vmatpush.msra.mxu0 %v943
  %1012 = vmatpush.msra.mxu0 %v941
  %1013 = vmatpush.msra.mxu0 %v939
  %1014 = vmatpush.msra.mxu0 %v937
  %1015 = vmatpush.msra.mxu0 %v935
  %1016 = vmatpush.msra.mxu0 %v933
  %1017 = vmatmul.f32.gmra.mxu0 %v996
  %v1018 = vpop.f32.mrf.mxu0
  %v1019 = vadd.f32 %v991, %v1018
  %1020 = vmatmul.f32.gmra.mxu0 %v999
  %v1021 = vpop.f32.mrf.mxu0
  %v1022 = vadd.f32 %v991, %v1021
  %1023 = vdwg.mxu0
  %1024 = vmatpush.msra.mxu0 0.0
  %1025 = vmatpush.msra.mxu0 0.0
  %1026 = vmatpush.msra.mxu0 0.0
  %1027 = vmatpush.msra.mxu0 0.0
  %1028 = vmatpush.msra.mxu0 0.0
  %1029 = vmatpush.msra.mxu0 0.0
  %1030 = vmatpush.msra.mxu0 0.0
  %1031 = vmatpush.msra.mxu0 0.0
  %1032 = vmatpush.msra.mxu0 %v948
  %1033 = vmatpush.msra.mxu0 %v946
  %1034 = vmatpush.msra.mxu0 %v944
  %1035 = vmatpush.msra.mxu0 %v942
  %1036 = vmatpush.msra.mxu0 %v940
  %1037 = vmatpush.msra.mxu0 %v938
  %1038 = vmatpush.msra.mxu0 %v936
  %1039 = vmatpush.msra.mxu0 %v934
  %1040 = vmatmul.f32.gmra.mxu0 %v996
  %v1041 = vpop.f32.mrf.mxu0
  %v1042 = vadd.f32 %v992, %v1041
  %1043 = vmatmul.f32.gmra.mxu0 %v999
  %v1044 = vpop.f32.mrf.mxu0
  %v1045 = vadd.f32 %v992, %v1044
  %1046 = vdwg.mxu0
  %1049 = vrot.lane.b32.xlu0 %v1019, 64
  %v1050 = vpop.permute.xlu0 %1049
  %1051 = vrot.lane.b32.xlu0 %v1022, 64
  %v1052 = vpop.permute.xlu0 %1051
  %v1053 = vsel %vm261, %v1019, 0
  %v1055 = vsel %vm261, %v1022, 0
  %v1057 = vsel %vm261, %v1050, 0
  %v1059 = vsel %vm261, %v1052, 0
  %1061 = vmatpush.xpose.msra.mxu0 0.0
  %1062 = vmatpush.xpose.msra.mxu0 0.0
  %1063 = vmatpush.xpose.msra.mxu0 0.0
  %1064 = vmatpush.xpose.msra.mxu0 0.0
  %1065 = vmatpush.xpose.msra.mxu0 0.0
  %1066 = vmatpush.xpose.msra.mxu0 0.0
  %1067 = vmatpush.xpose.msra.mxu0 0.0
  %1068 = vmatpush.xpose.msra.mxu0 0.0
  %1069 = vmatpush.xpose.msra.mxu0 0.0
  %1070 = vmatpush.xpose.msra.mxu0 0.0
  %1071 = vmatpush.xpose.msra.mxu0 0.0
  %1072 = vmatpush.xpose.msra.mxu0 0.0
  %1073 = vmatpush.xpose.msra.mxu0 0.0
  %1074 = vmatpush.xpose.msra.mxu0 0.0
  %1075 = vmatpush.xpose.msra.mxu0 %v1059
  %1076 = vmatpush.xpose.msra.mxu0 %v1057
  %1077 = vmatmul.f32.gmra.mxu0 %v1053
  %v1078 = vpop.f32.mrf.mxu0
  %v1079 = vadd.f32 0.0, %v1078
  %1080 = vmatmul.f32.gmra.mxu0 %v1055
  %v1081 = vpop.f32.mrf.mxu0
  %v1082 = vadd.f32 0.0, %v1081
  %1083 = vdwg.mxu0
  %1084 = vrot.lane.b32.xlu0 %v1019, 112
  %v1085 = vpop.permute.xlu0 %1084
  %1086 = vrot.lane.b32.xlu0 %v1022, 112
  %v1087 = vpop.permute.xlu0 %1086
  %1088 = vrot.lane.b32.xlu0 %v1019, 48
  %v1089 = vpop.permute.xlu0 %1088
  %1090 = vrot.lane.b32.xlu0 %v1022, 48
  %v1091 = vpop.permute.xlu0 %1090
  %v1092 = vsel %vm261, %v1085, 0
  %v1094 = vsel %vm261, %v1087, 0
  %v1096 = vsel %vm261, %v1089, 0
  %v1098 = vsel %vm261, %v1091, 0
  %1100 = vmatpush.xpose.msra.mxu0 0.0
  %1101 = vmatpush.xpose.msra.mxu0 0.0
  %1102 = vmatpush.xpose.msra.mxu0 0.0
  %1103 = vmatpush.xpose.msra.mxu0 0.0
  %1104 = vmatpush.xpose.msra.mxu0 0.0
  %1105 = vmatpush.xpose.msra.mxu0 0.0
  %1106 = vmatpush.xpose.msra.mxu0 0.0
  %1107 = vmatpush.xpose.msra.mxu0 0.0
  %1108 = vmatpush.xpose.msra.mxu0 0.0
  %1109 = vmatpush.xpose.msra.mxu0 0.0
  %1110 = vmatpush.xpose.msra.mxu0 0.0
  %1111 = vmatpush.xpose.msra.mxu0 0.0
  %1112 = vmatpush.xpose.msra.mxu0 0.0
  %1113 = vmatpush.xpose.msra.mxu0 0.0
  %1114 = vmatpush.xpose.msra.mxu0 %v1098
  %1115 = vmatpush.xpose.msra.mxu0 %v1096
  %1116 = vmatmul.f32.gmra.mxu0 %v1092
  %v1117 = vpop.f32.mrf.mxu0
  %v1118 = vadd.f32 0.0, %v1117
  %1119 = vmatmul.f32.gmra.mxu0 %v1094
  %v1120 = vpop.f32.mrf.mxu0
  %v1121 = vadd.f32 0.0, %v1120
  %1122 = vdwg.mxu0
  %1123 = vrot.lane.b32.xlu0 %v1019, 96
  %v1124 = vpop.permute.xlu0 %1123
  %1125 = vrot.lane.b32.xlu0 %v1022, 96
  %v1126 = vpop.permute.xlu0 %1125
  %1127 = vrot.lane.b32.xlu0 %v1019, 32
  %v1128 = vpop.permute.xlu0 %1127
  %1129 = vrot.lane.b32.xlu0 %v1022, 32
  %v1130 = vpop.permute.xlu0 %1129
  %v1131 = vsel %vm261, %v1124, 0
  %v1133 = vsel %vm261, %v1126, 0
  %v1135 = vsel %vm261, %v1128, 0
  %v1137 = vsel %vm261, %v1130, 0
  %1139 = vmatpush.xpose.msra.mxu0 0.0
  %1140 = vmatpush.xpose.msra.mxu0 0.0
  %1141 = vmatpush.xpose.msra.mxu0 0.0
  %1142 = vmatpush.xpose.msra.mxu0 0.0
  %1143 = vmatpush.xpose.msra.mxu0 0.0
  %1144 = vmatpush.xpose.msra.mxu0 0.0
  %1145 = vmatpush.xpose.msra.mxu0 0.0
  %1146 = vmatpush.xpose.msra.mxu0 0.0
  %1147 = vmatpush.xpose.msra.mxu0 0.0
  %1148 = vmatpush.xpose.msra.mxu0 0.0
  %1149 = vmatpush.xpose.msra.mxu0 0.0
  %1150 = vmatpush.xpose.msra.mxu0 0.0
  %1151 = vmatpush.xpose.msra.mxu0 0.0
  %1152 = vmatpush.xpose.msra.mxu0 0.0
  %1153 = vmatpush.xpose.msra.mxu0 %v1137
  %1154 = vmatpush.xpose.msra.mxu0 %v1135
  %1155 = vmatmul.f32.gmra.mxu0 %v1131
  %v1156 = vpop.f32.mrf.mxu0
  %v1157 = vadd.f32 0.0, %v1156
  %1158 = vmatmul.f32.gmra.mxu0 %v1133
  %v1159 = vpop.f32.mrf.mxu0
  %v1160 = vadd.f32 0.0, %v1159
  %1161 = vdwg.mxu0
  %1162 = vrot.lane.b32.xlu0 %v1019, 80
  %v1163 = vpop.permute.xlu0 %1162
  %1164 = vrot.lane.b32.xlu0 %v1022, 80
  %v1165 = vpop.permute.xlu0 %1164
  %1166 = vrot.lane.b32.xlu0 %v1019, 16
  %v1167 = vpop.permute.xlu0 %1166
  %1168 = vrot.lane.b32.xlu0 %v1022, 16
  %v1169 = vpop.permute.xlu0 %1168
  %v1170 = vsel %vm261, %v1163, 0
  %v1172 = vsel %vm261, %v1165, 0
  %v1174 = vsel %vm261, %v1167, 0
  %v1176 = vsel %vm261, %v1169, 0
  %1178 = vmatpush.xpose.msra.mxu0 0.0
  %1179 = vmatpush.xpose.msra.mxu0 0.0
  %1180 = vmatpush.xpose.msra.mxu0 0.0
  %1181 = vmatpush.xpose.msra.mxu0 0.0
  %1182 = vmatpush.xpose.msra.mxu0 0.0
  %1183 = vmatpush.xpose.msra.mxu0 0.0
  %1184 = vmatpush.xpose.msra.mxu0 0.0
  %1185 = vmatpush.xpose.msra.mxu0 0.0
  %1186 = vmatpush.xpose.msra.mxu0 0.0
  %1187 = vmatpush.xpose.msra.mxu0 0.0
  %1188 = vmatpush.xpose.msra.mxu0 0.0
  %1189 = vmatpush.xpose.msra.mxu0 0.0
  %1190 = vmatpush.xpose.msra.mxu0 0.0
  %1191 = vmatpush.xpose.msra.mxu0 0.0
  %1192 = vmatpush.xpose.msra.mxu0 %v1176
  %1193 = vmatpush.xpose.msra.mxu0 %v1174
  %1194 = vmatmul.f32.gmra.mxu0 %v1170
  %v1195 = vpop.f32.mrf.mxu0
  %v1196 = vadd.f32 0.0, %v1195
  %1197 = vmatmul.f32.gmra.mxu0 %v1172
  %v1198 = vpop.f32.mrf.mxu0
  %v1199 = vadd.f32 0.0, %v1198
  %1200 = vdwg.mxu0
  %v1201 = vmul.f32 %v1079, 0.25
  %v1202 = vmul.f32 %v1082, 0.25
  %v1203 = vmul.f32 %v1118, 0.25
  %v1204 = vmul.f32 %v1121, 0.25
  %v1205 = vmul.f32 %v1157, 0.25
  %v1206 = vmul.f32 %v1160, 0.25
  %v1207 = vmul.f32 %v1196, 0.25
  %v1208 = vmul.f32 %v1199, 0.25
  %v1209 = vsel %vm132, %v1201, -1e+30
  %v1210 = vsel %vm133, %v1202, -1e+30
  %v1211 = vsel %vm134, %v1203, -1e+30
  %v1212 = vsel %vm135, %v1204, -1e+30
  %v1213 = vsel %vm136, %v1205, -1e+30
  %v1214 = vsel %vm137, %v1206, -1e+30
  %v1215 = vsel %vm138, %v1207, -1e+30
  %v1216 = vsel %vm139, %v1208, -1e+30
  %v1217 = vsel %vm261, %v1209, -inf
  %1218 = vmax.xlane.f32.xlu0 %v1217
  %v1219 = vpop.xlane.xlu0 %1218
  %v1220 = vsel %vm261, %v1210, -inf
  %1221 = vmax.xlane.f32.xlu0 %v1220
  %v1222 = vpop.xlane.xlu0 %1221
  %v1223 = vsel %vm261, %v1211, -inf
  %1224 = vmax.xlane.f32.xlu0 %v1223
  %v1225 = vpop.xlane.xlu0 %1224
  %v1226 = vsel %vm261, %v1212, -inf
  %1227 = vmax.xlane.f32.xlu0 %v1226
  %v1228 = vpop.xlane.xlu0 %1227
  %v1229 = vsel %vm261, %v1213, -inf
  %1230 = vmax.xlane.f32.xlu0 %v1229
  %v1231 = vpop.xlane.xlu0 %1230
  %v1232 = vsel %vm261, %v1214, -inf
  %1233 = vmax.xlane.f32.xlu0 %v1232
  %v1234 = vpop.xlane.xlu0 %1233
  %v1235 = vsel %vm261, %v1215, -inf
  %1236 = vmax.xlane.f32.xlu0 %v1235
  %v1237 = vpop.xlane.xlu0 %1236
  %v1238 = vsel %vm261, %v1216, -inf
  %1239 = vmax.xlane.f32.xlu0 %v1238
  %v1240 = vpop.xlane.xlu0 %1239
  %v1241 = vsub.f32 %v1209, %v1219
  %v1242 = vsub.f32 %v1210, %v1222
  %v1243 = vsub.f32 %v1211, %v1225
  %v1244 = vsub.f32 %v1212, %v1228
  %v1245 = vsub.f32 %v1213, %v1231
  %v1246 = vsub.f32 %v1214, %v1234
  %v1247 = vsub.f32 %v1215, %v1237
  %v1248 = vsub.f32 %v1216, %v1240
  %v1249 = vmul.f32 %v1241, 1.442695
  %v1250 = vpow.pop %v1249
  %v1251 = vmul.f32 %v1242, 1.442695
  %v1252 = vpow.pop %v1251
  %v1253 = vmul.f32 %v1243, 1.442695
  %v1254 = vpow.pop %v1253
  %v1255 = vmul.f32 %v1244, 1.442695
  %v1256 = vpow.pop %v1255
  %v1257 = vmul.f32 %v1245, 1.442695
  %v1258 = vpow.pop %v1257
  %v1259 = vmul.f32 %v1246, 1.442695
  %v1260 = vpow.pop %v1259
  %v1261 = vmul.f32 %v1247, 1.442695
  %v1262 = vpow.pop %v1261
  %v1263 = vmul.f32 %v1248, 1.442695
  %v1264 = vpow.pop %v1263
  %v1265 = vsel %vm261, %v1250, 0.0
  %1266 = vadd.xlane.f32.xlu0 %v1265
  %v1267 = vpop.xlane.xlu0 %1266
  %v1268 = vsel %vm261, %v1252, 0.0
  %1269 = vadd.xlane.f32.xlu0 %v1268
  %v1270 = vpop.xlane.xlu0 %1269
  %v1271 = vsel %vm261, %v1254, 0.0
  %1272 = vadd.xlane.f32.xlu0 %v1271
  %v1273 = vpop.xlane.xlu0 %1272
  %v1274 = vsel %vm261, %v1256, 0.0
  %1275 = vadd.xlane.f32.xlu0 %v1274
  %v1276 = vpop.xlane.xlu0 %1275
  %v1277 = vsel %vm261, %v1258, 0.0
  %1278 = vadd.xlane.f32.xlu0 %v1277
  %v1279 = vpop.xlane.xlu0 %1278
  %v1280 = vsel %vm261, %v1260, 0.0
  %1281 = vadd.xlane.f32.xlu0 %v1280
  %v1282 = vpop.xlane.xlu0 %1281
  %v1283 = vsel %vm261, %v1262, 0.0
  %1284 = vadd.xlane.f32.xlu0 %v1283
  %v1285 = vpop.xlane.xlu0 %1284
  %v1286 = vsel %vm261, %v1264, 0.0
  %1287 = vadd.xlane.f32.xlu0 %v1286
  %v1288 = vpop.xlane.xlu0 %1287
  %v1289 = vrcp.pop %v1267
  %v1290 = vrcp.pop %v1270
  %v1291 = vrcp.pop %v1273
  %v1292 = vrcp.pop %v1276
  %v1293 = vrcp.pop %v1279
  %v1294 = vrcp.pop %v1282
  %v1295 = vrcp.pop %v1285
  %v1296 = vrcp.pop %v1288
  %v1297 = vmul.f32 %v1250, %v1289
  %v1298 = vmul.f32 %v1252, %v1290
  %v1299 = vmul.f32 %v1254, %v1291
  %v1300 = vmul.f32 %v1256, %v1292
  %v1301 = vmul.f32 %v1258, %v1293
  %v1302 = vmul.f32 %v1260, %v1294
  %v1303 = vmul.f32 %v1262, %v1295
  %v1304 = vmul.f32 %v1264, %v1296
  %v1306 = vsel %vm261, %v1297, 0
  %v1309 = vsel %vm261, %v1298, 0
  %1311 = vmatpush.msra.mxu0 0.0
  %1312 = vmatpush.msra.mxu0 0.0
  %1313 = vmatpush.msra.mxu0 0.0
  %1314 = vmatpush.msra.mxu0 0.0
  %1315 = vmatpush.msra.mxu0 0.0
  %1316 = vmatpush.msra.mxu0 0.0
  %1317 = vmatpush.msra.mxu0 0.0
  %1318 = vmatpush.msra.mxu0 0.0
  %1319 = vmatpush.msra.mxu0 0.0
  %1320 = vmatpush.msra.mxu0 0.0
  %1321 = vmatpush.msra.mxu0 0.0
  %1322 = vmatpush.msra.mxu0 0.0
  %1323 = vmatpush.msra.mxu0 0.0
  %1324 = vmatpush.msra.mxu0 0.0
  %1325 = vmatpush.msra.mxu0 %v1045
  %1326 = vmatpush.msra.mxu0 %v1042
  %1327 = vmatmul.f32.gmra.mxu0 %v1306
  %v1328 = vpop.f32.mrf.mxu0
  %v1329 = vadd.f32 0.0, %v1328
  %1330 = vmatmul.f32.gmra.mxu0 %v1309
  %v1331 = vpop.f32.mrf.mxu0
  %v1332 = vadd.f32 0.0, %v1331
  %1333 = vdwg.mxu0
  %1336 = vrot.lane.b32.xlu0 %v1042, 112
  %v1337 = vpop.permute.xlu0 %1336
  %1338 = vrot.lane.b32.xlu0 %v1045, 112
  %v1339 = vpop.permute.xlu0 %1338
  %v1343 = vsel %vm261, %v1299, 0
  %v1346 = vsel %vm261, %v1300, 0
  %1348 = vmatpush.msra.mxu0 0.0
  %1349 = vmatpush.msra.mxu0 0.0
  %1350 = vmatpush.msra.mxu0 0.0
  %1351 = vmatpush.msra.mxu0 0.0
  %1352 = vmatpush.msra.mxu0 0.0
  %1353 = vmatpush.msra.mxu0 0.0
  %1354 = vmatpush.msra.mxu0 0.0
  %1355 = vmatpush.msra.mxu0 0.0
  %1356 = vmatpush.msra.mxu0 0.0
  %1357 = vmatpush.msra.mxu0 0.0
  %1358 = vmatpush.msra.mxu0 0.0
  %1359 = vmatpush.msra.mxu0 0.0
  %1360 = vmatpush.msra.mxu0 0.0
  %1361 = vmatpush.msra.mxu0 0.0
  %1362 = vmatpush.msra.mxu0 %v1339
  %1363 = vmatpush.msra.mxu0 %v1337
  %1364 = vmatmul.f32.gmra.mxu0 %v1343
  %v1365 = vpop.f32.mrf.mxu0
  %v1366 = vadd.f32 0.0, %v1365
  %1367 = vmatmul.f32.gmra.mxu0 %v1346
  %v1368 = vpop.f32.mrf.mxu0
  %v1369 = vadd.f32 0.0, %v1368
  %1370 = vdwg.mxu0
  %v1372 = vsel %vm261, %v1366, 0
  %v1375 = vsel %vm261, %v1369, 0
  %1377 = vmatpush.msra.mxu0 0.0
  %1378 = vmatpush.msra.mxu0 0.0
  %1379 = vmatpush.msra.mxu0 0.0
  %1380 = vmatpush.msra.mxu0 0.0
  %1381 = vmatpush.msra.mxu0 0.0
  %1382 = vmatpush.msra.mxu0 0.0
  %1383 = vmatpush.msra.mxu0 0.0
  %1384 = vmatpush.msra.mxu0 0.0
  %1385 = vmatpush.msra.mxu0 0.0
  %1386 = vmatpush.msra.mxu0 0.0
  %1387 = vmatpush.msra.mxu0 0.0
  %1388 = vmatpush.msra.mxu0 0.0
  %1389 = vmatpush.msra.mxu0 0.0
  %1390 = vmatpush.msra.mxu0 0.0
  %1391 = vmatpush.msra.mxu0 %v952
  %1392 = vmatpush.msra.mxu0 %v951
  %1393 = vmatmul.f32.gmra.mxu0 %v1372
  %v1394 = vpop.f32.mrf.mxu0
  %v1395 = vadd.f32 0.0, %v1394
  %1396 = vmatmul.f32.gmra.mxu0 %v1375
  %v1397 = vpop.f32.mrf.mxu0
  %v1398 = vadd.f32 0.0, %v1397
  %1399 = vdwg.mxu0
  %v1401 = vsel %vm261, %v1329, 0
  %v1404 = vsel %vm261, %v1332, 0
  %1406 = vmatpush.msra.mxu0 0.0
  %1407 = vmatpush.msra.mxu0 0.0
  %1408 = vmatpush.msra.mxu0 0.0
  %1409 = vmatpush.msra.mxu0 0.0
  %1410 = vmatpush.msra.mxu0 0.0
  %1411 = vmatpush.msra.mxu0 0.0
  %1412 = vmatpush.msra.mxu0 0.0
  %1413 = vmatpush.msra.mxu0 0.0
  %1414 = vmatpush.msra.mxu0 0.0
  %1415 = vmatpush.msra.mxu0 0.0
  %1416 = vmatpush.msra.mxu0 0.0
  %1417 = vmatpush.msra.mxu0 0.0
  %1418 = vmatpush.msra.mxu0 0.0
  %1419 = vmatpush.msra.mxu0 0.0
  %1420 = vmatpush.msra.mxu0 %v950
  %1421 = vmatpush.msra.mxu0 %v949
  %1422 = vmatmul.f32.gmra.mxu0 %v1401
  %v1423 = vpop.f32.mrf.mxu0
  %v1424 = vadd.f32 %v1395, %v1423
  %1425 = vmatmul.f32.gmra.mxu0 %v1404
  %v1426 = vpop.f32.mrf.mxu0
  %v1427 = vadd.f32 %v1398, %v1426
  %1428 = vdwg.mxu0
  %1429 = vrot.lane.b32.xlu0 %v1042, 96
  %v1430 = vpop.permute.xlu0 %1429
  %1431 = vrot.lane.b32.xlu0 %v1045, 96
  %v1432 = vpop.permute.xlu0 %1431
  %v1436 = vsel %vm261, %v1301, 0
  %v1439 = vsel %vm261, %v1302, 0
  %1441 = vmatpush.msra.mxu0 0.0
  %1442 = vmatpush.msra.mxu0 0.0
  %1443 = vmatpush.msra.mxu0 0.0
  %1444 = vmatpush.msra.mxu0 0.0
  %1445 = vmatpush.msra.mxu0 0.0
  %1446 = vmatpush.msra.mxu0 0.0
  %1447 = vmatpush.msra.mxu0 0.0
  %1448 = vmatpush.msra.mxu0 0.0
  %1449 = vmatpush.msra.mxu0 0.0
  %1450 = vmatpush.msra.mxu0 0.0
  %1451 = vmatpush.msra.mxu0 0.0
  %1452 = vmatpush.msra.mxu0 0.0
  %1453 = vmatpush.msra.mxu0 0.0
  %1454 = vmatpush.msra.mxu0 0.0
  %1455 = vmatpush.msra.mxu0 %v1432
  %1456 = vmatpush.msra.mxu0 %v1430
  %1457 = vmatmul.f32.gmra.mxu0 %v1436
  %v1458 = vpop.f32.mrf.mxu0
  %v1459 = vadd.f32 0.0, %v1458
  %1460 = vmatmul.f32.gmra.mxu0 %v1439
  %v1461 = vpop.f32.mrf.mxu0
  %v1462 = vadd.f32 0.0, %v1461
  %1463 = vdwg.mxu0
  %v1465 = vsel %vm261, %v1459, 0
  %v1468 = vsel %vm261, %v1462, 0
  %1470 = vmatpush.msra.mxu0 0.0
  %1471 = vmatpush.msra.mxu0 0.0
  %1472 = vmatpush.msra.mxu0 0.0
  %1473 = vmatpush.msra.mxu0 0.0
  %1474 = vmatpush.msra.mxu0 0.0
  %1475 = vmatpush.msra.mxu0 0.0
  %1476 = vmatpush.msra.mxu0 0.0
  %1477 = vmatpush.msra.mxu0 0.0
  %1478 = vmatpush.msra.mxu0 0.0
  %1479 = vmatpush.msra.mxu0 0.0
  %1480 = vmatpush.msra.mxu0 0.0
  %1481 = vmatpush.msra.mxu0 0.0
  %1482 = vmatpush.msra.mxu0 0.0
  %1483 = vmatpush.msra.mxu0 0.0
  %1484 = vmatpush.msra.mxu0 %v954
  %1485 = vmatpush.msra.mxu0 %v953
  %1486 = vmatmul.f32.gmra.mxu0 %v1465
  %v1487 = vpop.f32.mrf.mxu0
  %v1488 = vadd.f32 0.0, %v1487
  %1489 = vmatmul.f32.gmra.mxu0 %v1468
  %v1490 = vpop.f32.mrf.mxu0
  %v1491 = vadd.f32 0.0, %v1490
  %1492 = vdwg.mxu0
  %v1493 = vadd.f32 %v1424, %v1488
  %v1494 = vadd.f32 %v1427, %v1491
  %1495 = vrot.lane.b32.xlu0 %v1042, 80
  %v1496 = vpop.permute.xlu0 %1495
  %1497 = vrot.lane.b32.xlu0 %v1045, 80
  %v1498 = vpop.permute.xlu0 %1497
  %v1502 = vsel %vm261, %v1303, 0
  %v1505 = vsel %vm261, %v1304, 0
  %1507 = vmatpush.msra.mxu0 0.0
  %1508 = vmatpush.msra.mxu0 0.0
  %1509 = vmatpush.msra.mxu0 0.0
  %1510 = vmatpush.msra.mxu0 0.0
  %1511 = vmatpush.msra.mxu0 0.0
  %1512 = vmatpush.msra.mxu0 0.0
  %1513 = vmatpush.msra.mxu0 0.0
  %1514 = vmatpush.msra.mxu0 0.0
  %1515 = vmatpush.msra.mxu0 0.0
  %1516 = vmatpush.msra.mxu0 0.0
  %1517 = vmatpush.msra.mxu0 0.0
  %1518 = vmatpush.msra.mxu0 0.0
  %1519 = vmatpush.msra.mxu0 0.0
  %1520 = vmatpush.msra.mxu0 0.0
  %1521 = vmatpush.msra.mxu0 %v1498
  %1522 = vmatpush.msra.mxu0 %v1496
  %1523 = vmatmul.f32.gmra.mxu0 %v1502
  %v1524 = vpop.f32.mrf.mxu0
  %v1525 = vadd.f32 0.0, %v1524
  %1526 = vmatmul.f32.gmra.mxu0 %v1505
  %v1527 = vpop.f32.mrf.mxu0
  %v1528 = vadd.f32 0.0, %v1527
  %1529 = vdwg.mxu0
  %v1531 = vsel %vm261, %v1525, 0
  %v1534 = vsel %vm261, %v1528, 0
  %1536 = vmatpush.msra.mxu0 0.0
  %1537 = vmatpush.msra.mxu0 0.0
  %1538 = vmatpush.msra.mxu0 0.0
  %1539 = vmatpush.msra.mxu0 0.0
  %1540 = vmatpush.msra.mxu0 0.0
  %1541 = vmatpush.msra.mxu0 0.0
  %1542 = vmatpush.msra.mxu0 0.0
  %1543 = vmatpush.msra.mxu0 0.0
  %1544 = vmatpush.msra.mxu0 0.0
  %1545 = vmatpush.msra.mxu0 0.0
  %1546 = vmatpush.msra.mxu0 0.0
  %1547 = vmatpush.msra.mxu0 0.0
  %1548 = vmatpush.msra.mxu0 0.0
  %1549 = vmatpush.msra.mxu0 0.0
  %1550 = vmatpush.msra.mxu0 %v956
  %1551 = vmatpush.msra.mxu0 %v955
  %1552 = vmatmul.f32.gmra.mxu0 %v1531
  %v1553 = vpop.f32.mrf.mxu0
  %v1554 = vadd.f32 0.0, %v1553
  %1555 = vmatmul.f32.gmra.mxu0 %v1534
  %v1556 = vpop.f32.mrf.mxu0
  %v1557 = vadd.f32 0.0, %v1556
  %1558 = vdwg.mxu0
  %v1559 = vadd.f32 %v1493, %v1554
  %v1560 = vadd.f32 %v1494, %v1557
  %v1561 = vadd.f32 %v1559, %v983
  %v1562 = vadd.f32 %v1560, %v983
  %v1563 = vadd.f32 %v931, %v1561
  %v1564 = vadd.f32 %v932, %v1562
  %v1565 = vsel %vm202, %v1563, 0.0
  %1566 = vadd.xlane.f32.xlu0 %v1565
  %v1567 = vpop.xlane.xlu0 %1566
  %v1568 = vsel %vm202, %v1564, 0.0
  %1569 = vadd.xlane.f32.xlu0 %v1568
  %v1570 = vpop.xlane.xlu0 %1569
  %v1571 = vmul.f32 %v1567, %v786
  %v1572 = vmul.f32 %v1570, %v786
  %v1573 = vsub.f32 %v1563, %v1571
  %v1574 = vsub.f32 %v1564, %v1572
  %v1575 = vmul.f32 %v1573, %v1573
  %v1576 = vmul.f32 %v1574, %v1574
  %v1577 = vsel %vm202, %v1575, 0.0
  %1578 = vadd.xlane.f32.xlu0 %v1577
  %v1579 = vpop.xlane.xlu0 %1578
  %v1580 = vsel %vm202, %v1576, 0.0
  %1581 = vadd.xlane.f32.xlu0 %v1580
  %v1582 = vpop.xlane.xlu0 %1581
  %v1583 = vmul.f32 %v1579, %v786
  %v1584 = vmul.f32 %v1582, %v786
  %v1585 = vadd.f32 %v1583, 1e-05
  %v1586 = vadd.f32 %v1584, 1e-05
  %v1587 = vrsqrt.pop %v1585
  %v1588 = vmul.f32 %v1587, %v1585
  %v1589 = vmul.f32 %v1588, %v1587
  %v1590 = vmul.f32 0.5, %v1589
  %v1591 = vsub.f32 1.5, %v1590
  %v1592 = vmul.f32 %v1587, %v1591
  %vm1593 = vweird.f32 %v1585
  %vm1594 = vweird.f32 %v1587
  %vm1595 = vmor %vm1593, %vm1594
  %v1596 = vsel %vm1595, %v1587, %v1592
  %v1597 = vrsqrt.pop %v1586
  %v1598 = vmul.f32 %v1597, %v1586
  %v1599 = vmul.f32 %v1598, %v1597
  %v1600 = vmul.f32 0.5, %v1599
  %v1601 = vsub.f32 1.5, %v1600
  %v1602 = vmul.f32 %v1597, %v1601
  %vm1603 = vweird.f32 %v1586
  %vm1604 = vweird.f32 %v1597
  %vm1605 = vmor %vm1603, %vm1604
  %v1606 = vsel %vm1605, %v1597, %v1602
  %v1607 = vmul.f32 %v1573, %v1596
  %v1608 = vmul.f32 %v1574, %v1606
  %v1609 = vmul.f32 %v1607, %v984
  %v1610 = vmul.f32 %v1608, %v984
  %v1611 = vadd.f32 %v1609, %v985
  %v1612 = vadd.f32 %v1610, %v985
  %v1614 = vsel %vm202, %v1611, 0
  %v1617 = vsel %vm202, %v1612, 0
  %1619 = vmatpush.msra.mxu0 0.0
  %1620 = vmatpush.msra.mxu0 0.0
  %1621 = vmatpush.msra.mxu0 0.0
  %1622 = vmatpush.msra.mxu0 0.0
  %1623 = vmatpush.msra.mxu0 0.0
  %1624 = vmatpush.msra.mxu0 0.0
  %1625 = vmatpush.msra.mxu0 0.0
  %1626 = vmatpush.msra.mxu0 0.0
  %1627 = vmatpush.msra.mxu0 %v964
  %1628 = vmatpush.msra.mxu0 %v963
  %1629 = vmatpush.msra.mxu0 %v962
  %1630 = vmatpush.msra.mxu0 %v961
  %1631 = vmatpush.msra.mxu0 %v960
  %1632 = vmatpush.msra.mxu0 %v959
  %1633 = vmatpush.msra.mxu0 %v958
  %1634 = vmatpush.msra.mxu0 %v957
  %1635 = vmatmul.f32.gmra.mxu0 %v1614
  %v1636 = vpop.f32.mrf.mxu0
  %v1637 = vadd.f32 %v986, %v1636
  %1638 = vmatmul.f32.gmra.mxu0 %v1617
  %v1639 = vpop.f32.mrf.mxu0
  %v1640 = vadd.f32 %v986, %v1639
  %1641 = vdwg.mxu0
  %v1642 = vmax.f32 %v1637, 0.0
  %v1643 = vmax.f32 %v1640, 0.0
  %1644 = vmatpush.msra.mxu0 %v980
  %1645 = vmatpush.msra.mxu0 %v979
  %1646 = vmatpush.msra.mxu0 %v978
  %1647 = vmatpush.msra.mxu0 %v977
  %1648 = vmatpush.msra.mxu0 %v976
  %1649 = vmatpush.msra.mxu0 %v975
  %1650 = vmatpush.msra.mxu0 %v974
  %1651 = vmatpush.msra.mxu0 %v973
  %1652 = vmatpush.msra.mxu0 %v972
  %1653 = vmatpush.msra.mxu0 %v971
  %1654 = vmatpush.msra.mxu0 %v970
  %1655 = vmatpush.msra.mxu0 %v969
  %1656 = vmatpush.msra.mxu0 %v968
  %1657 = vmatpush.msra.mxu0 %v967
  %1658 = vmatpush.msra.mxu0 %v966
  %1659 = vmatpush.msra.mxu0 %v965
  %1660 = vmatmul.f32.gmra.mxu0 %v1642
  %v1661 = vpop.f32.mrf.mxu0
  %v1662 = vadd.f32 %v987, %v1661
  %1663 = vmatmul.f32.gmra.mxu0 %v1643
  %v1664 = vpop.f32.mrf.mxu0
  %v1665 = vadd.f32 %v987, %v1664
  %1666 = vdwg.mxu0
  %v1667 = vadd.f32 %v1611, %v1662
  %v1668 = vadd.f32 %v1612, %v1665
  %v1669 = vsel %vm202, %v1667, 0.0
  %1670 = vadd.xlane.f32.xlu0 %v1669
  %v1671 = vpop.xlane.xlu0 %1670
  %v1672 = vsel %vm202, %v1668, 0.0
  %1673 = vadd.xlane.f32.xlu0 %v1672
  %v1674 = vpop.xlane.xlu0 %1673
  %v1675 = vmul.f32 %v1671, %v786
  %v1676 = vmul.f32 %v1674, %v786
  %v1677 = vsub.f32 %v1667, %v1675
  %v1678 = vsub.f32 %v1668, %v1676
  %v1679 = vmul.f32 %v1677, %v1677
  %v1680 = vmul.f32 %v1678, %v1678
  %v1681 = vsel %vm202, %v1679, 0.0
  %1682 = vadd.xlane.f32.xlu0 %v1681
  %v1683 = vpop.xlane.xlu0 %1682
  %v1684 = vsel %vm202, %v1680, 0.0
  %1685 = vadd.xlane.f32.xlu0 %v1684
  %v1686 = vpop.xlane.xlu0 %1685
  %v1687 = vmul.f32 %v1683, %v786
  %v1688 = vmul.f32 %v1686, %v786
  %v1689 = vadd.f32 %v1687, 1e-05
  %v1690 = vadd.f32 %v1688, 1e-05
  %v1691 = vrsqrt.pop %v1689
  %v1692 = vmul.f32 %v1691, %v1689
  %v1693 = vmul.f32 %v1692, %v1691
  %v1694 = vmul.f32 0.5, %v1693
  %v1695 = vsub.f32 1.5, %v1694
  %v1696 = vmul.f32 %v1691, %v1695
  %vm1697 = vweird.f32 %v1689
  %vm1698 = vweird.f32 %v1691
  %vm1699 = vmor %vm1697, %vm1698
  %v1700 = vsel %vm1699, %v1691, %v1696
  %v1701 = vrsqrt.pop %v1690
  %v1702 = vmul.f32 %v1701, %v1690
  %v1703 = vmul.f32 %v1702, %v1701
  %v1704 = vmul.f32 0.5, %v1703
  %v1705 = vsub.f32 1.5, %v1704
  %v1706 = vmul.f32 %v1701, %v1705
  %vm1707 = vweird.f32 %v1690
  %vm1708 = vweird.f32 %v1701
  %vm1709 = vmor %vm1707, %vm1708
  %v1710 = vsel %vm1709, %v1701, %v1706
  %v1711 = vmul.f32 %v1677, %v1700
  %v1712 = vmul.f32 %v1678, %v1710
  %v1713 = vmul.f32 %v1711, %v988
  %v1714 = vmul.f32 %v1712, %v988
  %v1715 = vadd.f32 %v1713, %v989
  %v1716 = vadd.f32 %v1714, %v989
  %v1717 = vld [vmem:[%s1 + $0x520] ss:$0 sm:$0xff]
  %v1718 = vld [vmem:[%s1 + $0x521] ss:$0 sm:$0xff]
  %v1719 = vmul.f32 %v1715, %v1717
  %v1720 = vmul.f32 %v1716, %v1717
  %v1721 = vsel %vm202, %v1719, 0.0
  %1722 = vadd.xlane.f32.xlu0 %v1721
  %v1723 = vpop.xlane.xlu0 %1722
  %v1724 = vsel %vm202, %v1720, 0.0
  %1725 = vadd.xlane.f32.xlu0 %v1724
  %v1726 = vpop.xlane.xlu0 %1725
  %v1727 = vadd.f32 %v1723, %v1718
  %v1728 = vadd.f32 %v1726, %v1718
  %1730 = vset.pattern.permute.xlu0 0
  %1731 = vperm.xlu0 %1730, %v1727
  %v1732 = vpop.permute.xlu0 %1731
  %1735 = vset.pattern.permute.xlu0 0
  %1736 = vperm.xlu0 %1735, %v1728
  %v1737 = vpop.permute.xlu0 %1736
  %1739 = vst [vmem:[%s2] sm:$0xff] %v1732
  %1740 = vst [vmem:[%s2 + $0x8] sm:$0xff] %v1737
  // Predicated region
  $region10: #{model_forward.1} parent=0 // pred_check
    _
  $region11: #{model_forward.1} parent=0 // pred_check_branch
    %1742 = sbr.rel (0) target = $region13
  $region12: #{model_forward.1} parent=0 // pred_region
    _
  $region13: #{model_forward.1} parent=0 // pred_fallthru
    _
  // Predicated region
  $region14: #{model_forward.1} parent=0 // pred_check
    _
  $region15: #{model_forward.1} parent=0 // pred_check_branch
    %1744 = sbr.rel (0) target = $region17
  $region16: #{model_forward.1} parent=0 // pred_region
    _
  $region17: #{model_forward.1} parent=0 // pred_fallthru
    _

</llo_original>
